<compile_context>
chip_gen: v7x
topology: tpu7x:2x2x1
jax: 0.10.0
libtpu: 0.0.40
codegen_flags: <defaults>
</compile_context>

<pallas_src>
import jax
import jax.numpy as jnp
from jax.experimental import pallas as pl
from jax.experimental.pallas import tpu as pltpu


def _round_up(x, m):
    return ((x + m - 1) // m) * m


def _pick_tiles(K, N):
    """Lane-dense tiles; keep >=2 N steps when possible (v7x has 2 TensorCores)."""
    k128 = _round_up(K, 128)
    n128 = _round_up(N, 128)
    tn = 256 if n128 >= 512 else 128
    tk = 512 if k128 >= 512 else k128
    return tk, tn, _round_up(K, tk), _round_up(N, tn)


def _fourier_dense_kernel(x_ref, w_ref, b_ref, o_ref, acc_ref):
    """One (n-tile, k-tile) step of (Xr + iXi) @ (Wr + iWi) + b."""
    k = pl.program_id(1)

    @pl.when(k == 0)
    def _():
        acc_ref[...] = jnp.zeros_like(acc_ref)

    xr = x_ref[0]              # (B, tk)  bf16
    xi = x_ref[1]
    wr = w_ref[0]              # (tk, tn) bf16
    wi = w_ref[1]
    # Four MXU matmuls (bf16 inputs), f32 accumulation.
    rr = jnp.dot(xr, wr, preferred_element_type=jnp.float32)
    ii = jnp.dot(xi, wi, preferred_element_type=jnp.float32)
    ri = jnp.dot(xr, wi, preferred_element_type=jnp.float32)
    ir = jnp.dot(xi, wr, preferred_element_type=jnp.float32)
    acc_ref[0] = acc_ref[0] + (rr - ii)
    acc_ref[1] = acc_ref[1] + (ri + ir)

    @pl.when(k == pl.num_programs(1) - 1)
    def _():
        # bias (2, 1, tn) broadcasts over the batch rows; output dtype is f32.
        o_ref[...] = acc_ref[...] + b_ref[...]


def _complex_mode_mix(x2, w2, b2, *, tk, tn):
    """x2:(2,B,Kp) bf16, w2:(2,Kp,Np) bf16, b2:(2,1,Np) f32 -> (2,B,Np) f32."""
    _, B, Kp = x2.shape
    _, _, Np = w2.shape
    grid = (Np // tn, Kp // tk)         # reduction (K) axis is last / innermost
    return pl.pallas_call(
        _fourier_dense_kernel,
        out_shape=jax.ShapeDtypeStruct((2, B, Np), jnp.float32),
        grid_spec=pltpu.PrefetchScalarGridSpec(
            num_scalar_prefetch=0,
            grid=grid,
            in_specs=[
                pl.BlockSpec((2, B, tk), lambda j, k: (0, 0, k)),   # activations
                pl.BlockSpec((2, tk, tn), lambda j, k: (0, k, j)),  # weights
                pl.BlockSpec((2, 1, tn), lambda j, k: (0, 0, j)),   # bias
            ],
            out_specs=pl.BlockSpec((2, B, tn), lambda j, k: (0, 0, j)),
            scratch_shapes=[pltpu.VMEM((2, B, tn), jnp.float32)],   # f32 acc
        ),
        compiler_params=pltpu.CompilerParams(
            dimension_semantics=("parallel", "arbitrary"),
            # Tiles are sized to ~1 MiB of double-buffered weight stream; an
            # explicit 32 MiB cap is safe on all of v5e/v6e/v7x.
            vmem_limit_bytes=32 * 1024 * 1024,
        ),
    )(x2, w2, b2)


class FourierDense2d:
    """JAX/Pallas port of the PyTorch FourierDense2d module."""

    def __init__(self, key, in_channels, out_channels, size_x, size_y,
                 bias=True, periodic=False):
        self.in_channels = in_channels
        self.out_channels = out_channels
        if not periodic:
            self.size_x = size_x
            self.size_y = size_y
        else:
            self.size_x = size_x // 2
            self.size_y = size_y // 2
        self.bias = bias
        self.periodic = periodic

        kw, kb = jax.random.split(key)
        scale_w = 1.0 / (in_channels * out_channels)
        scale_b = 1.0 / out_channels
        # Parameters stored like torch.view_as_real: trailing dim 2 = (re, im).
        self.weights = scale_w * jax.random.uniform(
            kw,
            (in_channels, out_channels, self.size_x, self.size_x,
             self.size_y, self.size_y, 2),
            dtype=jnp.float32)
        self.biases = scale_b * jax.random.uniform(
            kb, (out_channels, self.size_x, self.size_y, 2), dtype=jnp.float32)

        # ---- one-time GEMM-layout prep (hoisted out of the forward path) ----
        K = in_channels * self.size_x * self.size_y
        N = out_channels * self.size_x * self.size_y
        self._K, self._N = K, N
        self._tk, self._tn, self._K_pad, self._N_pad = _pick_tiles(K, N)

        # weights (i, o, x, m, y, n, re/im) -> (re/im, i, x, y, o, m, n) -> (2, K, N)
        w2 = jnp.transpose(self.weights, (6, 0, 2, 4, 1, 3, 5)).reshape(2, K, N)
        w2 = jnp.pad(w2, ((0, 0), (0, self._K_pad - K), (0, self._N_pad - N)))
        self._w2 = w2.astype(jnp.bfloat16)   # bf16 MXU inputs, f32 accumulation

        if bias:
            b2 = jnp.transpose(self.biases, (3, 0, 1, 2)).reshape(2, 1, N)
        else:
            b2 = jnp.zeros((2, 1, N), jnp.float32)
        self._b2 = jnp.pad(
            b2, ((0, 0), (0, 0), (0, self._N_pad - N))).astype(jnp.float32)

    def __call__(self, x):
        sx, sy = self.size_x, self.size_y
        co = self.out_channels
        if not self.periodic:
            # F.pad(x, [0, sy, 0, sx]): pad last dim (W) by sy, dim -2 (H) by sx.
            x = jnp.pad(x, ((0, 0), (0, 0), (0, sx), (0, sy)))
        B, _, H, W = x.shape

        # TODO(synk): rfft2 / irfft2 have no Pallas primitive; done in plain JAX.
        x_ft = jnp.fft.rfft2(x)                       # (B, C_in, H, W//2+1)
        x_ft_t = x_ft[:, :, :sx, :sy]                 # (B, C_in, sx, sy)

        xr = jnp.real(x_ft_t).reshape(B, self._K)
        xi = jnp.imag(x_ft_t).reshape(B, self._K)
        x2 = jnp.stack([xr, xi]).astype(jnp.bfloat16)  # (2, B, K)
        if self._K_pad > self._K:
            x2 = jnp.pad(x2, ((0, 0), (0, 0), (0, self._K_pad - self._K)))

        o2 = _complex_mode_mix(x2, self._w2, self._b2, tk=self._tk, tn=self._tn)
        o2 = o2[:, :, :self._N]
        modes = (o2[0] + 1j * o2[1]).reshape(B, co, sx, sy)

        # Out-channel-shaped spectrum (identical to zeros_like(x_ft) when ci == co,
        # but does not break when ci != co).
        out_ft = jnp.zeros((B, co, H, x_ft.shape[-1]), dtype=x_ft.dtype)
        out_ft = out_ft.at[:, :, :sx, :sy].set(modes)
        out = jnp.fft.irfft2(out_ft, s=(H, W))        # (B, co, H, W)
        if not self.periodic:
            out = out[..., :sx, :sy]
        return out


def _reference(module, x):
    """Pure-JAX (f32) reference mirroring the PyTorch forward exactly."""
    sx, sy = module.size_x, module.size_y
    if not module.periodic:
        x = jnp.pad(x, ((0, 0), (0, 0), (0, sx), (0, sy)))
    H, W = x.shape[-2], x.shape[-1]
    x_ft = jnp.fft.rfft2(x)
    w_c = module.weights[..., 0] + 1j * module.weights[..., 1]
    modes = jnp.einsum('bixy,ioxmyn->bomn', x_ft[:, :, :sx, :sy], w_c,
                       precision=jax.lax.Precision.HIGHEST)
    if module.bias:
        modes = modes + (module.biases[..., 0] + 1j * module.biases[..., 1])
    out_ft = jnp.zeros((x.shape[0], module.out_channels, H, x_ft.shape[-1]),
                       dtype=x_ft.dtype)
    out_ft = out_ft.at[:, :, :sx, :sy].set(modes)
    out = jnp.fft.irfft2(out_ft, s=(H, W))
    if not module.periodic:
        out = out[..., :sx, :sy]
    return out


if __name__ == "__main__":
    key = jax.random.PRNGKey(0)
    k_param, k_x = jax.random.split(key)

    # K = N = 4*16*16 = 1024 -> grid (4, 2): exercises both the parallel N axis
    # and the K accumulation loop.
    B, C_in, C_out, SX, SY = 2, 4, 4, 16, 16
    module = FourierDense2d(k_param, C_in, C_out, SX, SY,
                            bias=True, periodic=False)
    x = jax.random.normal(k_x, (B, C_in, SX, SY), dtype=jnp.float32)

    out = jax.block_until_ready(module(x))
    ref = jax.block_until_ready(_reference(module, x))

    assert out.shape == (B, C_out, SX, SY), out.shape
    # bf16 weights/activations on the MXU (f32 accumulation) -> looser tolerance
    # than the pure-f32 reference; observed error is well below this bound.
    assert jnp.allclose(out, ref, atol=2e-2, rtol=2e-2), float(
        jnp.max(jnp.abs(out - ref)))

    print("KERNEL_OK")
</pallas_src>

<mosaic_0001>
module attributes {stable_mosaic.version = 11 : i64} {
  func.func @_fourier_dense_kernel(%arg0: i32, %arg1: i32, %arg2: memref<2x2x512xbf16, #tpu.memory_space<vmem>>, %arg3: memref<2x512x256xbf16, #tpu.memory_space<vmem>>, %arg4: memref<2x1x256xf32, #tpu.memory_space<vmem>>, %arg5: memref<2x2x256xf32, #tpu.memory_space<vmem>>, %arg6: memref<2x2x256xf32, #tpu.memory_space<vmem>>) attributes {dimension_semantics = [#tpu.dimension_semantics<parallel>, #tpu.dimension_semantics<arbitrary>], iteration_bounds = array<i64: 4, 2>, scalar_prefetch = 0 : i64, scratch_operands = 1 : i64, tpu.core_type = #tpu.core_type<tc>, window_params = [{transform_indices = @transform_0, window_bounds = array<i64: 2, 2, 512>}, {transform_indices = @transform_1, window_bounds = array<i64: 2, 512, 256>}, {transform_indices = @transform_2, window_bounds = array<i64: 2, 1, 256>}, {transform_indices = @transform_3, window_bounds = array<i64: 2, 2, 256>}]} {
    %c0_i32 = arith.constant 0 : i32
    %0 = arith.cmpi eq, %arg1, %c0_i32 : i32
    %1 = arith.extui %0 : i1 to i32
    %c0_i32_0 = arith.constant 0 : i32
    %2 = arith.cmpi ne, %1, %c0_i32_0 : i32
    scf.if %2 {
      %cst_27 = arith.constant 0.000000e+00 : f32
      %32 = vector.broadcast %cst_27 : f32 to vector<2x2x256xf32>
      %c0_28 = arith.constant 0 : index
      %c0_29 = arith.constant 0 : index
      %c0_30 = arith.constant 0 : index
      %33 = vector.load %arg6[%c0_28, %c0_29, %c0_30] : memref<2x2x256xf32, #tpu.memory_space<vmem>>, vector<2x2x256xf32>
      tpu.vector_store %arg6[%c0_28, %c0_29, %c0_30], %32 {strides = array<i32>} : memref<2x2x256xf32, #tpu.memory_space<vmem>>, vector<2x2x256xf32>,
    } else {
    }
    %c0 = arith.constant 0 : index
    %c0_1 = arith.constant 0 : index
    %c0_2 = arith.constant 0 : index
    %3 = vector.load %arg2[%c0, %c0_1, %c0_2] : memref<2x2x512xbf16, #tpu.memory_space<vmem>>, vector<1x2x512xbf16>
    %4 = vector.shape_cast %3 : vector<1x2x512xbf16> to vector<2x512xbf16>
    %c1 = arith.constant 1 : index
    %c0_3 = arith.constant 0 : index
    %c0_4 = arith.constant 0 : index
    %5 = vector.load %arg2[%c1, %c0_3, %c0_4] : memref<2x2x512xbf16, #tpu.memory_space<vmem>>, vector<1x2x512xbf16>
    %6 = vector.shape_cast %5 : vector<1x2x512xbf16> to vector<2x512xbf16>
    %c0_5 = arith.constant 0 : index
    %c0_6 = arith.constant 0 : index
    %c0_7 = arith.constant 0 : index
    %7 = vector.load %arg3[%c0_5, %c0_6, %c0_7] : memref<2x512x256xbf16, #tpu.memory_space<vmem>>, vector<1x512x256xbf16>
    %8 = vector.shape_cast %7 : vector<1x512x256xbf16> to vector<512x256xbf16>
    %c1_8 = arith.constant 1 : index
    %c0_9 = arith.constant 0 : index
    %c0_10 = arith.constant 0 : index
    %9 = vector.load %arg3[%c1_8, %c0_9, %c0_10] : memref<2x512x256xbf16, #tpu.memory_space<vmem>>, vector<1x512x256xbf16>
    %10 = vector.shape_cast %9 : vector<1x512x256xbf16> to vector<512x256xbf16>
    %cst = arith.constant dense<0.000000e+00> : vector<2x256xf32>
    %11 = tpu.matmul %4, %8, %cst {dimension_numbers = #tpu.dot_dimension_numbers<[1], [0], [0], [1], [0, 0, 1, 1], [], []>} : vector<2x512xbf16>, vector<512x256xbf16>, vector<2x256xf32> -> vector<2x256xf32>
    %cst_11 = arith.constant dense<0.000000e+00> : vector<2x256xf32>
    %12 = tpu.matmul %6, %10, %cst_11 {dimension_numbers = #tpu.dot_dimension_numbers<[1], [0], [0], [1], [0, 0, 1, 1], [], []>} : vector<2x512xbf16>, vector<512x256xbf16>, vector<2x256xf32> -> vector<2x256xf32>
    %cst_12 = arith.constant dense<0.000000e+00> : vector<2x256xf32>
    %13 = tpu.matmul %4, %10, %cst_12 {dimension_numbers = #tpu.dot_dimension_numbers<[1], [0], [0], [1], [0, 0, 1, 1], [], []>} : vector<2x512xbf16>, vector<512x256xbf16>, vector<2x256xf32> -> vector<2x256xf32>
    %cst_13 = arith.constant dense<0.000000e+00> : vector<2x256xf32>
    %14 = tpu.matmul %6, %8, %cst_13 {dimension_numbers = #tpu.dot_dimension_numbers<[1], [0], [0], [1], [0, 0, 1, 1], [], []>} : vector<2x512xbf16>, vector<512x256xbf16>, vector<2x256xf32> -> vector<2x256xf32>
    %c0_14 = arith.constant 0 : index
    %c0_15 = arith.constant 0 : index
    %c0_16 = arith.constant 0 : index
    %15 = vector.load %arg6[%c0_14, %c0_15, %c0_16] : memref<2x2x256xf32, #tpu.memory_space<vmem>>, vector<1x2x256xf32>
    %16 = vector.shape_cast %15 : vector<1x2x256xf32> to vector<2x256xf32>
    %17 = arith.subf %11, %12 : vector<2x256xf32>
    %18 = arith.addf %16, %17 : vector<2x256xf32>
    %c0_17 = arith.constant 0 : index
    %c0_18 = arith.constant 0 : index
    %c0_19 = arith.constant 0 : index
    %19 = vector.load %arg6[%c0_17, %c0_18, %c0_19] : memref<2x2x256xf32, #tpu.memory_space<vmem>>, vector<1x2x256xf32>
    %20 = vector.shape_cast %19 : vector<1x2x256xf32> to vector<2x256xf32>
    %21 = vector.shape_cast %18 : vector<2x256xf32> to vector<1x2x256xf32>
    tpu.vector_store %arg6[%c0_17, %c0_18, %c0_19], %21 {strides = array<i32>} : memref<2x2x256xf32, #tpu.memory_space<vmem>>, vector<1x2x256xf32>,
    %c1_20 = arith.constant 1 : index
    %c0_21 = arith.constant 0 : index
    %c0_22 = arith.constant 0 : index
    %22 = vector.load %arg6[%c1_20, %c0_21, %c0_22] : memref<2x2x256xf32, #tpu.memory_space<vmem>>, vector<1x2x256xf32>
    %23 = vector.shape_cast %22 : vector<1x2x256xf32> to vector<2x256xf32>
    %24 = arith.addf %13, %14 : vector<2x256xf32>
    %25 = arith.addf %23, %24 : vector<2x256xf32>
    %c1_23 = arith.constant 1 : index
    %c0_24 = arith.constant 0 : index
    %c0_25 = arith.constant 0 : index
    %26 = vector.load %arg6[%c1_23, %c0_24, %c0_25] : memref<2x2x256xf32, #tpu.memory_space<vmem>>, vector<1x2x256xf32>
    %27 = vector.shape_cast %26 : vector<1x2x256xf32> to vector<2x256xf32>
    %28 = vector.shape_cast %25 : vector<2x256xf32> to vector<1x2x256xf32>
    tpu.vector_store %arg6[%c1_23, %c0_24, %c0_25], %28 {strides = array<i32>} : memref<2x2x256xf32, #tpu.memory_space<vmem>>, vector<1x2x256xf32>,
    %c1_i32 = arith.constant 1 : i32
    %29 = arith.cmpi eq, %arg1, %c1_i32 : i32
    %30 = arith.extui %29 : i1 to i32
    %c0_i32_26 = arith.constant 0 : i32
    %31 = arith.cmpi ne, %30, %c0_i32_26 : i32
    scf.if %31 {
      %c0_27 = arith.constant 0 : index
      %c0_28 = arith.constant 0 : index
      %c0_29 = arith.constant 0 : index
      %32 = vector.load %arg6[%c0_27, %c0_28, %c0_29] : memref<2x2x256xf32, #tpu.memory_space<vmem>>, vector<2x2x256xf32>
      %c0_30 = arith.constant 0 : index
      %c0_31 = arith.constant 0 : index
      %c0_32 = arith.constant 0 : index
      %33 = vector.load %arg4[%c0_30, %c0_31, %c0_32] : memref<2x1x256xf32, #tpu.memory_space<vmem>>, vector<2x1x256xf32>
      %34 = vector.broadcast %33 : vector<2x1x256xf32> to vector<2x2x256xf32>
      %35 = arith.addf %32, %34 : vector<2x2x256xf32>
      %c0_33 = arith.constant 0 : index
      %c0_34 = arith.constant 0 : index
      %c0_35 = arith.constant 0 : index
      %36 = vector.load %arg5[%c0_33, %c0_34, %c0_35] : memref<2x2x256xf32, #tpu.memory_space<vmem>>, vector<2x2x256xf32>
      tpu.vector_store %arg5[%c0_33, %c0_34, %c0_35], %35 {strides = array<i32>} : memref<2x2x256xf32, #tpu.memory_space<vmem>>, vector<2x2x256xf32>,
    } else {
    }
    return
  }
  func.func @transform_0(%arg0: i32, %arg1: i32) -> (i32, i32, i32) {
    %c0_i32 = arith.constant 0 : i32
    %c0_i32_0 = arith.constant 0 : i32
    %c0_i32_1 = arith.constant 0 : i32
    return %c0_i32, %c0_i32_0, %arg1 : i32, i32, i32
  }
  func.func @transform_1(%arg0: i32, %arg1: i32) -> (i32, i32, i32) {
    %c0_i32 = arith.constant 0 : i32
    %c0_i32_0 = arith.constant 0 : i32
    return %c0_i32, %arg1, %arg0 : i32, i32, i32
  }
  func.func @transform_2(%arg0: i32, %arg1: i32) -> (i32, i32, i32) {
    %c0_i32 = arith.constant 0 : i32
    %c0_i32_0 = arith.constant 0 : i32
    %c0_i32_1 = arith.constant 0 : i32
    return %c0_i32, %c0_i32_0, %arg0 : i32, i32, i32
  }
  func.func @transform_3(%arg0: i32, %arg1: i32) -> (i32, i32, i32) {
    %c0_i32 = arith.constant 0 : i32
    %c0_i32_0 = arith.constant 0 : i32
    %c0_i32_1 = arith.constant 0 : i32
    return %c0_i32, %c0_i32_0, %arg0 : i32, i32, i32
  }
}

</mosaic_0001>

<llo_original>
// kernel: tpu_custom_call.1
$region0: #{tpu_custom_call.1}
  #allocation0 [shape = 'u32[]', space=smem, size = 0x4, offset = 0x4, fixed_abs, tag = 'smem constant byte address 0x4 - core index']
  #allocation1 [shape = 'u32[144,128]{1,0:T(1,128)}', space=vmem, size = 0x12000, scoped, tag = 'internal scratch']
  #allocation2 [shape = 'f32[2,2,256]{2,1,0:T(2,128)}', space=vmem, size = 0x1000, scoped, tag = 'scratch operand']
  #allocation10 [shape = 's32[]', space=sflag, size = 0x4, offset = 0, fixed_abs, tag = 'sflag constant byte address 0x0 - dummy sync flag']
  %s0 = inlined_call_operand.hbm [shape: bf16[2,2,1024], index: 0, kind: input, shape index: {}]
  %s1 = inlined_call_operand.hbm [shape: bf16[2,1024,1024], index: 1, kind: input, shape index: {}]
  %s2 = inlined_call_operand.hbm [shape: f32[2,1,1024], index: 2, kind: input, shape index: {}]
  %s3 = inlined_call_operand.hbm [shape: f32[2,2,1024], index: 3, kind: output, shape index: {}]
  %s4 = sld [smem:[#allocation0]]
  $region65: #{tpu_custom_call.1} parent=0
    _
  %s6 = ssub.s32 1, %s4
  %s7 = scalar_select 0, %s6, %s4
  $region1: #{tpu_custom_call.1} parent=0
    #allocation3 [shape = 'u8[8192]{0}', space=vmem, size = 0x2000, scoped, tag = 'input window, operand 0']
    #allocation4 [shape = 's32[2]{0}', space=sflag, size = 0x8, scoped, tag = 'scoped memory for tpu_custom_call.1']
    #allocation5 [shape = 's32[2]{0}', space=sflag, size = 0x8, scoped, tag = 'scoped memory for tpu_custom_call.1']
    #allocation6 [shape = 'u8[1048576]{0}', space=vmem, size = 0x100000, scoped, tag = 'input window, operand 1']
    #allocation7 [shape = 's32[2]{0}', space=sflag, size = 0x8, scoped, tag = 'scoped memory for tpu_custom_call.1']
    #allocation8 [shape = 'u8[4096]{0}', space=vmem, size = 0x1000, scoped, tag = 'input window, operand 2']
    #allocation9 [shape = 'u8[8192]{0}', space=vmem, size = 0x2000, scoped, tag = 'output window, operand 0']
    %8 = vsyncpa [#allocation4], 0
    %s9 = scalar_lea.sflag [#allocation4], 1
    %10 = vsyncpa %s9, 0
    %11 = vsyncpa [#allocation7], 0
    %s12 = scalar_lea.sflag [#allocation7], 1
    %13 = vsyncpa %s12, 0
    %14 = vsyncpa [#allocation5], 0
    %s15 = scalar_lea.sflag [#allocation5], 1
    %16 = vsyncpa %s15, 0
    loop: start=0, step=1, limit=10
    $region2: #{tpu_custom_call.1} parent=1 // loop_pre_header
      _
    $region3: #{tpu_custom_call.1} parent=1 // loop_header
      %s18 = sphi 0, %s22
      %p19 = scmp.ge.s32.totalorder %s18, 10
      %s25 = sphi 0, %s37
      %s26 = sphi 0, %s33
      %s27 = sphi 0, %s25
      %s28 = sphi 0, %s26
      %s29 = sphi 0, %s27
      %s30 = sphi 0, %s28
      %s40 = sphi 0, %s42
      %s43 = sphi 0, %s40
      %s44 = sphi 0, %s43
      %s60 = sphi 0, %s44
      %s68 = sphi 0, %s70
      %s71 = sphi 0, %s68
      %s72 = sphi 0, %s71
      %s88 = sphi 0, %s72
      %s94 = sphi 0, %s96
      %s97 = sphi 0, %s94
      %s98 = sphi 0, %s97
      %s114 = sphi 0, %s98
      %s120 = sphi 0, %s122
      %s123 = sphi 0, %s120
      %s124 = sphi 0, %s123
      %s140 = sphi 0, %s124
    $region4: #{tpu_custom_call.1} parent=1 // loop_header_branch
      %21 = sbr.rel (%p19) target = $region8
    $region5: #{tpu_custom_call.1} parent=1 // loop_body
      %s23 = ssub.s32 %s18, 1
      %s24 = ssub.s32 %s18, 2
      %s31 = sadd.s32 1, %s26
      %p32 = scmp.ge.s32.totalorder %s31, 2
      %s33 = scalar_select %p32, 0, %s31
      %s34 = sadd.s32 1, %s25
      %s35 = scalar_select %p32, %s34, %s25
      %p36 = scmp.ge.s32.totalorder %s35, 4
      %s37 = scalar_select %p36, 0, %s35
      %s38 = ssub.s32 %s26, %s33
      %p39 = scmp.eq.s32.totalorder %s38, 0
      %s41 = sadd.s32 %s40, 1
      %s42 = scalar_select %p39, %s40, %s41
      %p45 = pneg %p39
      %p46 = scmp.eq.s32.totalorder %s18, 7
      %p47 = por %p45, %p46
      %p48 = scmp.ne.s32.totalorder %s40, %s43
      %p49 = scmp.eq.s32.totalorder %s18, 0
      %p50 = por %p48, %p49
      %p51 = scmp.ne.s32.totalorder %s40, %s43
      %p52 = scmp.eq.s32.totalorder %s23, 7
      %p53 = por %p51, %p52
      %p54 = scmp.ne.s32.totalorder %s43, %s44
      %p55 = scmp.eq.s32.totalorder %s23, 0
      %p56 = por %p54, %p55
      %p57 = scmp.ne.s32.totalorder %s43, %s44
      %p58 = scmp.eq.s32.totalorder %s24, 7
      %p59 = por %p57, %p58
      %p61 = scmp.ne.s32.totalorder %s44, %s60
      %p62 = scmp.eq.s32.totalorder %s24, 0
      %p63 = por %p61, %p62
      %s64 = ssub.s32 %s26, %s33
      %s65 = ssub.s32 %s25, %s37
      %s66 = sor.u32 %s64, %s65
      %p67 = scmp.eq.s32.totalorder %s66, 0
      %s69 = sadd.s32 %s68, 1
      %s70 = scalar_select %p67, %s68, %s69
      %p73 = pneg %p67
      %p74 = scmp.eq.s32.totalorder %s18, 7
      %p75 = por %p73, %p74
      %p76 = scmp.ne.s32.totalorder %s68, %s71
      %p77 = scmp.eq.s32.totalorder %s18, 0
      %p78 = por %p76, %p77
      %p79 = scmp.ne.s32.totalorder %s68, %s71
      %p80 = scmp.eq.s32.totalorder %s23, 7
      %p81 = por %p79, %p80
      %p82 = scmp.ne.s32.totalorder %s71, %s72
      %p83 = scmp.eq.s32.totalorder %s23, 0
      %p84 = por %p82, %p83
      %p85 = scmp.ne.s32.totalorder %s71, %s72
      %p86 = scmp.eq.s32.totalorder %s24, 7
      %p87 = por %p85, %p86
      %p89 = scmp.ne.s32.totalorder %s72, %s88
      %p90 = scmp.eq.s32.totalorder %s24, 0
      %p91 = por %p89, %p90
      %s92 = ssub.s32 %s25, %s37
      %p93 = scmp.eq.s32.totalorder %s92, 0
      %s95 = sadd.s32 %s94, 1
      %s96 = scalar_select %p93, %s94, %s95
      %p99 = pneg %p93
      %p100 = scmp.eq.s32.totalorder %s18, 7
      %p101 = por %p99, %p100
      %p102 = scmp.ne.s32.totalorder %s94, %s97
      %p103 = scmp.eq.s32.totalorder %s18, 0
      %p104 = por %p102, %p103
      %p105 = scmp.ne.s32.totalorder %s94, %s97
      %p106 = scmp.eq.s32.totalorder %s23, 7
      %p107 = por %p105, %p106
      %p108 = scmp.ne.s32.totalorder %s97, %s98
      %p109 = scmp.eq.s32.totalorder %s23, 0
      %p110 = por %p108, %p109
      %p111 = scmp.ne.s32.totalorder %s97, %s98
      %p112 = scmp.eq.s32.totalorder %s24, 7
      %p113 = por %p111, %p112
      %p115 = scmp.ne.s32.totalorder %s98, %s114
      %p116 = scmp.eq.s32.totalorder %s24, 0
      %p117 = por %p115, %p116
      %s118 = ssub.s32 %s25, %s37
      %p119 = scmp.eq.s32.totalorder %s118, 0
      %s121 = sadd.s32 %s120, 1
      %s122 = scalar_select %p119, %s120, %s121
      %p125 = pneg %p119
      %p126 = scmp.eq.s32.totalorder %s18, 7
      %p127 = por %p125, %p126
      %p128 = scmp.ne.s32.totalorder %s120, %s123
      %p129 = scmp.eq.s32.totalorder %s18, 0
      %p130 = por %p128, %p129
      %p131 = scmp.ne.s32.totalorder %s120, %s123
      %p132 = scmp.eq.s32.totalorder %s23, 7
      %p133 = por %p131, %p132
      %p134 = scmp.ne.s32.totalorder %s123, %s124
      %p135 = scmp.eq.s32.totalorder %s23, 0
      %p136 = por %p134, %p135
      %p137 = scmp.ne.s32.totalorder %s123, %s124
      %p138 = scmp.eq.s32.totalorder %s24, 7
      %p139 = por %p137, %p138
      %p141 = scmp.ne.s32.totalorder %s124, %s140
      %p142 = scmp.eq.s32.totalorder %s24, 0
      %p143 = por %p141, %p142
      %p144 = scmp.le.s32.totalorder 1, %s18
      %p145 = scmp.lt.s32.totalorder %s18, 9
      %p146 = pnand %p144, %p145
      %p147 = pneg %p146
      // Predicated region
      $region9: #{tpu_custom_call.1} parent=5 // pred_check
        _
      $region10: #{tpu_custom_call.1} parent=5 // pred_check_branch
        %149 = sbr.rel (%p146) target = $region12
      $region11: #{tpu_custom_call.1} parent=5 // pred_region
        %s150 = ssub.s32 %s18, 1
      $region12: #{tpu_custom_call.1} parent=5 // pred_fallthru
        _
      %p151 = scmp.lt.s32.totalorder %s18, 8
      // Predicated region
      $region13: #{tpu_custom_call.1} parent=5 // pred_check
        %p152 = pneg %p151
      $region14: #{tpu_custom_call.1} parent=5 // pred_check_branch
        %154 = sbr.rel (%p152) target = $region16
      $region15: #{tpu_custom_call.1} parent=5 // pred_region
        // Predicated region
        $region17: #{tpu_custom_call.1} parent=15 // pred_check
          %p155 = pneg %p50
        $region18: #{tpu_custom_call.1} parent=15 // pred_check_branch
          %157 = sbr.rel (%p155) target = $region20
        $region19: #{tpu_custom_call.1} parent=15 // pred_region
          %s158 = sand.u32 %s40, 1
          %s159 = scalar_lea.sflag [#allocation4], %s158
          %s160 = sand.u32 %s40, 1
          %s161 = smul.addr %s160, 8
          %s162 = scalar_lea.vmem [#allocation3], %s161
          %s163 = smul.u32 4, %s26
          %s165 = ssub.s32 128, 128
          %166 = vsyncadd %s159, %s165
          %s167 = smul.addr %s163, 16
          %s168 = scalar_lea.hbm %s0, %s167
          %s169 = sshll.u32 %s162, 4
          %s170 = int_to_ptr.vmem [resolvable:$true] %s169
          %175 = dma.hbm_to_vmem [thread:$0]  %s168, 128, %s170, %s159, 128, 64, 4
        $region20: #{tpu_custom_call.1} parent=15 // pred_fallthru
          _
        // Predicated region
        $region21: #{tpu_custom_call.1} parent=15 // pred_check
          %p176 = pneg %p78
        $region22: #{tpu_custom_call.1} parent=15 // pred_check_branch
          %178 = sbr.rel (%p176) target = $region24
        $region23: #{tpu_custom_call.1} parent=15 // pred_region
          #allocation11 [shape = 'u32[6]{0}', space=smem, size = 0x18, scoped, tag = 'DMA stride descriptor']
          %s179 = sand.u32 %s18, 1
          %s180 = scalar_lea.sflag [#allocation7], %s179
          %s181 = sand.u32 %s68, 1
          %s182 = smul.addr %s181, 1024
          %s183 = scalar_lea.vmem [#allocation6], %s182
          %s184 = smul.u32 64, %s26
          %s185 = smul.u32 2, %s25
          %s187 = ssub.s32 16384, 16384
          %188 = vsyncadd %s180, %s187
          %s189 = smul.addr %s184, 8
          %s190 = sadd.s32 %s185, %s189
          %s191 = smul.addr %s190, 64
          %s192 = scalar_lea.hbm %s1, %s191
          %s194 = sshll.u32 1, 14
          %s195 = sxor.u32 4294967295, %s194
          %s197 = sld [smem:[#allocation0]]
          %s198 = sadd.s32 2, %s197
          %s200 = sshll.u32 7, 26
          %s201 = sxor.u32 4294967295, %s200
          %s202 = sand.u32 0, %s201
          %s203 = sshll.u32 %s198, 26
          %s204 = sor.u32 %s202, %s203
          %s205 = sshll.u32 %s183, 4
          %s206 = int_to_ptr.vmem [resolvable:$true] %s205
          %212 = sst [smem:[#allocation11]] 65536
          %s213 = scalar_lea.smem [#allocation11], 1
          %214 = sst [smem:[%s213]] 8192
          %s215 = scalar_lea.smem [#allocation11], 2
          %216 = sst [smem:[%s215]] 64
          %s217 = scalar_lea.smem [#allocation11], 3
          %218 = sst [smem:[%s217]] 512
          %s219 = scalar_lea.smem [#allocation11], 4
          %220 = sst [smem:[%s219]] 128
          %s221 = scalar_lea.smem [#allocation11], 5
          %222 = sst [smem:[%s221]] 8
          %224 = dma.general %s192, 16384, %s206, %s180, [#allocation10], [#allocation11], %s204, 0
        $region24: #{tpu_custom_call.1} parent=15 // pred_fallthru
          _
        // Predicated region
        $region25: #{tpu_custom_call.1} parent=15 // pred_check
          %p225 = pneg %p104
        $region26: #{tpu_custom_call.1} parent=15 // pred_check_branch
          %227 = sbr.rel (%p225) target = $region28
        $region27: #{tpu_custom_call.1} parent=15 // pred_region
          %s228 = sand.u32 %s18, 1
          %s229 = scalar_lea.sflag [#allocation7], %s228
          %s230 = sand.u32 %s94, 1
          %s231 = smul.addr %s230, 4
          %s232 = scalar_lea.vmem [#allocation8], %s231
          %s233 = smul.u32 2, %s25
          %s235 = ssub.s32 64, 64
          %236 = vsyncadd %s229, %s235
          %s237 = smul.addr %s233, 16
          %s238 = scalar_lea.hbm %s2, %s237
          %s239 = sshll.u32 %s232, 4
          %s240 = int_to_ptr.vmem [resolvable:$true] %s239
          %245 = dma.hbm_to_vmem [thread:$0]  %s238, 64, %s240, %s229, 128, 32, 2
        $region28: #{tpu_custom_call.1} parent=15 // pred_fallthru
          _
      $region16: #{tpu_custom_call.1} parent=5 // pred_fallthru
        _
      %p246 = scmp.le.s32.totalorder 1, %s18
      %p247 = scmp.lt.s32.totalorder %s18, 9
      %p248 = pnand %p246, %p247
      %p249 = pneg %p248
      // Predicated region
      $region29: #{tpu_custom_call.1} parent=5 // pred_check
        _
      $region30: #{tpu_custom_call.1} parent=5 // pred_check_branch
        %251 = sbr.rel (%p248) target = $region32
      $region31: #{tpu_custom_call.1} parent=5 // pred_region
        %s252 = ssub.s32 %s18, 1
        %s253 = sand.u32 %s43, 1
        %s254 = scalar_lea.sflag [#allocation4], %s253
        %s255 = sand.u32 %s43, 1
        %s256 = smul.addr %s255, 8
        %s257 = scalar_lea.vmem [#allocation3], %s256
        // Predicated region
        $region33: #{tpu_custom_call.1} parent=31 // pred_check
          %p258 = pneg %p56
        $region34: #{tpu_custom_call.1} parent=31 // pred_check_branch
          %260 = sbr.rel (%p258) target = $region36
        $region35: #{tpu_custom_call.1} parent=31 // pred_region
          %261 = dma.done %s254, 128
        $region36: #{tpu_custom_call.1} parent=31 // pred_fallthru
          _
        %s262 = sand.u32 %s23, 1
        %s263 = scalar_lea.sflag [#allocation7], %s262
        %s264 = sand.u32 %s71, 1
        %s265 = smul.addr %s264, 1024
        %s266 = scalar_lea.vmem [#allocation6], %s265
        // Predicated region
        $region37: #{tpu_custom_call.1} parent=31 // pred_check
          %p267 = pneg %p84
        $region38: #{tpu_custom_call.1} parent=31 // pred_check_branch
          %269 = sbr.rel (%p267) target = $region40
        $region39: #{tpu_custom_call.1} parent=31 // pred_region
          %270 = dma.done %s263, 16384
        $region40: #{tpu_custom_call.1} parent=31 // pred_fallthru
          _
        %s271 = sand.u32 %s23, 1
        %s272 = scalar_lea.sflag [#allocation7], %s271
        %s273 = sand.u32 %s97, 1
        %s274 = smul.addr %s273, 4
        %s275 = scalar_lea.vmem [#allocation8], %s274
        // Predicated region
        $region41: #{tpu_custom_call.1} parent=31 // pred_check
          %p276 = pneg %p110
        $region42: #{tpu_custom_call.1} parent=31 // pred_check_branch
          %278 = sbr.rel (%p276) target = $region44
        $region43: #{tpu_custom_call.1} parent=31 // pred_region
          %279 = dma.done %s272, 64
        $region44: #{tpu_custom_call.1} parent=31 // pred_fallthru
          _
        %s280 = sand.u32 %s43, 1
        %s281 = scalar_lea.sflag [#allocation4], %s280
        %s282 = sand.u32 %s43, 1
        %s283 = smul.addr %s282, 8
        %s284 = scalar_lea.vmem [#allocation3], %s283
        %p285 = pneg %p56
        %p286 = pneg %p53
        %s287 = sand.u32 %s23, 1
        %s288 = scalar_lea.sflag [#allocation7], %s287
        %s289 = sand.u32 %s71, 1
        %s290 = smul.addr %s289, 1024
        %s291 = scalar_lea.vmem [#allocation6], %s290
        %p292 = pneg %p84
        %p293 = pneg %p81
        %s294 = sand.u32 %s23, 1
        %s295 = scalar_lea.sflag [#allocation7], %s294
        %s296 = sand.u32 %s97, 1
        %s297 = smul.addr %s296, 4
        %s298 = scalar_lea.vmem [#allocation8], %s297
        %p299 = pneg %p110
        %p300 = pneg %p107
        %p301 = pneg %p136
        %p302 = pneg %p133
        %s303 = sand.u32 %s123, 1
        %s304 = scalar_lea.sflag [#allocation5], %s303
        %s305 = sand.u32 %s123, 1
        %s306 = smul.addr %s305, 8
        %s307 = scalar_lea.vmem [#allocation9], %s306
        %s308 = smul.u32 4, %s28
        %s309 = smul.u32 64, %s28
        %s310 = smul.u32 2, %s27
        %s311 = smul.u32 2, %s27
        %s312 = smul.u32 2, %s27
        %p313 = scmp.eq.s32.totalorder %s28, 0
        // Predicated region
        $region45: #{tpu_custom_call.1} parent=31 // pred_check
          %p314 = pneg %p313
        $region46: #{tpu_custom_call.1} parent=31 // pred_check_branch
          %316 = sbr.rel (%p314) target = $region48
        $region47: #{tpu_custom_call.1} parent=31 // pred_region
          %317 = vst [vmem:[#allocation2] sm:$0xf] 0.0
          %318 = vst [vmem:[#allocation2 + $0x4] sm:$0xf] 0.0
        $region48: #{tpu_custom_call.1} parent=31 // pred_fallthru
          _
        %v319 = vld [vmem:[%s257] sm:$0xf]
        %s320 = scalar_lea.vmem %s257, 4 [#allocation3]
        %v321 = vld [vmem:[%s320] sm:$0xf]
        %v322 = vld [vmem:[%s266] sm:$0xff]
        %v323 = vld [vmem:[%s266 + $0x8] sm:$0xff]
        %v324 = vld [vmem:[%s266 + $0x10] sm:$0xff]
        %v325 = vld [vmem:[%s266 + $0x18] sm:$0xff]
        %v326 = vld [vmem:[%s266 + $0x20] sm:$0xff]
        %v327 = vld [vmem:[%s266 + $0x28] sm:$0xff]
        %v328 = vld [vmem:[%s266 + $0x30] sm:$0xff]
        %v329 = vld [vmem:[%s266 + $0x38] sm:$0xff]
        %v330 = vld [vmem:[%s266 + $0x40] sm:$0xff]
        %v331 = vld [vmem:[%s266 + $0x48] sm:$0xff]
        %v332 = vld [vmem:[%s266 + $0x50] sm:$0xff]
        %v333 = vld [vmem:[%s266 + $0x58] sm:$0xff]
        %v334 = vld [vmem:[%s266 + $0x60] sm:$0xff]
        %v335 = vld [vmem:[%s266 + $0x68] sm:$0xff]
        %v336 = vld [vmem:[%s266 + $0x70] sm:$0xff]
        %v337 = vld [vmem:[%s266 + $0x78] sm:$0xff]
        %v338 = vld [vmem:[%s266 + $0x80] sm:$0xff]
        %v339 = vld [vmem:[%s266 + $0x88] sm:$0xff]
        %v340 = vld [vmem:[%s266 + $0x90] sm:$0xff]
        %v341 = vld [vmem:[%s266 + $0x98] sm:$0xff]
        %v342 = vld [vmem:[%s266 + $0xa0] sm:$0xff]
        %v343 = vld [vmem:[%s266 + $0xa8] sm:$0xff]
        %v344 = vld [vmem:[%s266 + $0xb0] sm:$0xff]
        %v345 = vld [vmem:[%s266 + $0xb8] sm:$0xff]
        %v346 = vld [vmem:[%s266 + $0xc0] sm:$0xff]
        %v347 = vld [vmem:[%s266 + $0xc8] sm:$0xff]
        %v348 = vld [vmem:[%s266 + $0xd0] sm:$0xff]
        %v349 = vld [vmem:[%s266 + $0xd8] sm:$0xff]
        %v350 = vld [vmem:[%s266 + $0xe0] sm:$0xff]
        %v351 = vld [vmem:[%s266 + $0xe8] sm:$0xff]
        %v352 = vld [vmem:[%s266 + $0xf0] sm:$0xff]
        %v353 = vld [vmem:[%s266 + $0xf8] sm:$0xff]
        %v354 = vld [vmem:[%s266 + $0x100] sm:$0xff]
        %v355 = vld [vmem:[%s266 + $0x108] sm:$0xff]
        %v356 = vld [vmem:[%s266 + $0x110] sm:$0xff]
        %v357 = vld [vmem:[%s266 + $0x118] sm:$0xff]
        %v358 = vld [vmem:[%s266 + $0x120] sm:$0xff]
        %v359 = vld [vmem:[%s266 + $0x128] sm:$0xff]
        %v360 = vld [vmem:[%s266 + $0x130] sm:$0xff]
        %v361 = vld [vmem:[%s266 + $0x138] sm:$0xff]
        %v362 = vld [vmem:[%s266 + $0x140] sm:$0xff]
        %v363 = vld [vmem:[%s266 + $0x148] sm:$0xff]
        %v364 = vld [vmem:[%s266 + $0x150] sm:$0xff]
        %v365 = vld [vmem:[%s266 + $0x158] sm:$0xff]
        %v366 = vld [vmem:[%s266 + $0x160] sm:$0xff]
        %v367 = vld [vmem:[%s266 + $0x168] sm:$0xff]
        %v368 = vld [vmem:[%s266 + $0x170] sm:$0xff]
        %v369 = vld [vmem:[%s266 + $0x178] sm:$0xff]
        %v370 = vld [vmem:[%s266 + $0x180] sm:$0xff]
        %v371 = vld [vmem:[%s266 + $0x188] sm:$0xff]
        %v372 = vld [vmem:[%s266 + $0x190] sm:$0xff]
        %v373 = vld [vmem:[%s266 + $0x198] sm:$0xff]
        %v374 = vld [vmem:[%s266 + $0x1a0] sm:$0xff]
        %v375 = vld [vmem:[%s266 + $0x1a8] sm:$0xff]
        %v376 = vld [vmem:[%s266 + $0x1b0] sm:$0xff]
        %v377 = vld [vmem:[%s266 + $0x1b8] sm:$0xff]
        %v378 = vld [vmem:[%s266 + $0x1c0] sm:$0xff]
        %v379 = vld [vmem:[%s266 + $0x1c8] sm:$0xff]
        %v380 = vld [vmem:[%s266 + $0x1d0] sm:$0xff]
        %v381 = vld [vmem:[%s266 + $0x1d8] sm:$0xff]
        %v382 = vld [vmem:[%s266 + $0x1e0] sm:$0xff]
        %v383 = vld [vmem:[%s266 + $0x1e8] sm:$0xff]
        %v384 = vld [vmem:[%s266 + $0x1f0] sm:$0xff]
        %v385 = vld [vmem:[%s266 + $0x1f8] sm:$0xff]
        %s386 = scalar_lea.vmem %s266, 512 [#allocation6]
        %v387 = vld [vmem:[%s386] sm:$0xff]
        %v388 = vld [vmem:[%s386 + $0x8] sm:$0xff]
        %v389 = vld [vmem:[%s386 + $0x10] sm:$0xff]
        %v390 = vld [vmem:[%s386 + $0x18] sm:$0xff]
        %v391 = vld [vmem:[%s386 + $0x20] sm:$0xff]
        %v392 = vld [vmem:[%s386 + $0x28] sm:$0xff]
        %v393 = vld [vmem:[%s386 + $0x30] sm:$0xff]
        %v394 = vld [vmem:[%s386 + $0x38] sm:$0xff]
        %v395 = vld [vmem:[%s386 + $0x40] sm:$0xff]
        %v396 = vld [vmem:[%s386 + $0x48] sm:$0xff]
        %v397 = vld [vmem:[%s386 + $0x50] sm:$0xff]
        %v398 = vld [vmem:[%s386 + $0x58] sm:$0xff]
        %v399 = vld [vmem:[%s386 + $0x60] sm:$0xff]
        %v400 = vld [vmem:[%s386 + $0x68] sm:$0xff]
        %v401 = vld [vmem:[%s386 + $0x70] sm:$0xff]
        %v402 = vld [vmem:[%s386 + $0x78] sm:$0xff]
        %v403 = vld [vmem:[%s386 + $0x80] sm:$0xff]
        %v404 = vld [vmem:[%s386 + $0x88] sm:$0xff]
        %v405 = vld [vmem:[%s386 + $0x90] sm:$0xff]
        %v406 = vld [vmem:[%s386 + $0x98] sm:$0xff]
        %v407 = vld [vmem:[%s386 + $0xa0] sm:$0xff]
        %v408 = vld [vmem:[%s386 + $0xa8] sm:$0xff]
        %v409 = vld [vmem:[%s386 + $0xb0] sm:$0xff]
        %v410 = vld [vmem:[%s386 + $0xb8] sm:$0xff]
        %v411 = vld [vmem:[%s386 + $0xc0] sm:$0xff]
        %v412 = vld [vmem:[%s386 + $0xc8] sm:$0xff]
        %v413 = vld [vmem:[%s386 + $0xd0] sm:$0xff]
        %v414 = vld [vmem:[%s386 + $0xd8] sm:$0xff]
        %v415 = vld [vmem:[%s386 + $0xe0] sm:$0xff]
        %v416 = vld [vmem:[%s386 + $0xe8] sm:$0xff]
        %v417 = vld [vmem:[%s386 + $0xf0] sm:$0xff]
        %v418 = vld [vmem:[%s386 + $0xf8] sm:$0xff]
        %v419 = vld [vmem:[%s386 + $0x100] sm:$0xff]
        %v420 = vld [vmem:[%s386 + $0x108] sm:$0xff]
        %v421 = vld [vmem:[%s386 + $0x110] sm:$0xff]
        %v422 = vld [vmem:[%s386 + $0x118] sm:$0xff]
        %v423 = vld [vmem:[%s386 + $0x120] sm:$0xff]
        %v424 = vld [vmem:[%s386 + $0x128] sm:$0xff]
        %v425 = vld [vmem:[%s386 + $0x130] sm:$0xff]
        %v426 = vld [vmem:[%s386 + $0x138] sm:$0xff]
        %v427 = vld [vmem:[%s386 + $0x140] sm:$0xff]
        %v428 = vld [vmem:[%s386 + $0x148] sm:$0xff]
        %v429 = vld [vmem:[%s386 + $0x150] sm:$0xff]
        %v430 = vld [vmem:[%s386 + $0x158] sm:$0xff]
        %v431 = vld [vmem:[%s386 + $0x160] sm:$0xff]
        %v432 = vld [vmem:[%s386 + $0x168] sm:$0xff]
        %v433 = vld [vmem:[%s386 + $0x170] sm:$0xff]
        %v434 = vld [vmem:[%s386 + $0x178] sm:$0xff]
        %v435 = vld [vmem:[%s386 + $0x180] sm:$0xff]
        %v436 = vld [vmem:[%s386 + $0x188] sm:$0xff]
        %v437 = vld [vmem:[%s386 + $0x190] sm:$0xff]
        %v438 = vld [vmem:[%s386 + $0x198] sm:$0xff]
        %v439 = vld [vmem:[%s386 + $0x1a0] sm:$0xff]
        %v440 = vld [vmem:[%s386 + $0x1a8] sm:$0xff]
        %v441 = vld [vmem:[%s386 + $0x1b0] sm:$0xff]
        %v442 = vld [vmem:[%s386 + $0x1b8] sm:$0xff]
        %v443 = vld [vmem:[%s386 + $0x1c0] sm:$0xff]
        %v444 = vld [vmem:[%s386 + $0x1c8] sm:$0xff]
        %v445 = vld [vmem:[%s386 + $0x1d0] sm:$0xff]
        %v446 = vld [vmem:[%s386 + $0x1d8] sm:$0xff]
        %v447 = vld [vmem:[%s386 + $0x1e0] sm:$0xff]
        %v448 = vld [vmem:[%s386 + $0x1e8] sm:$0xff]
        %v449 = vld [vmem:[%s386 + $0x1f0] sm:$0xff]
        %v450 = vld [vmem:[%s386 + $0x1f8] sm:$0xff]
        %v453 = vunpack.c.l.s4 1966171168
        %v454 = vunpack.c.0.s8 %v453
        %v455 = vlaneseq
        %v456 = vshrl.u32 %v455, 7
        %v457 = vsub.s32 %v454, %v456
        %v458 = vrot.slane %v319, %v457
        %v459 = vcombine.high %v458, %v458
        %v461 = vunpack.c.l.s4 1966171168
        %v462 = vunpack.c.0.s8 %v461
        %v463 = vlaneseq
        %v464 = vshrl.u32 %v463, 7
        %v465 = vsub.s32 %v462, %v464
        %v466 = vrot.slane %v458, %v465
        %v468 = vunpack.c.l.s4 1966171168
        %v469 = vunpack.c.0.s8 %v468
        %v470 = vlaneseq
        %v471 = vshrl.u32 %v470, 7
        %v472 = vsub.s32 %v469, %v471
        %v473 = vrot.slane %v459, %v472
        %v474 = vcombine.high %v466, %v466
        %v475 = vcombine.high %v473, %v473
        %v544 = vunpack.c.l.b16 %v322
        %v545 = vunpack.c.h.b16 %v322
        %v546 = vunpack.c.l.b16 %v323
        %v547 = vunpack.c.h.b16 %v323
        %v548 = vunpack.c.l.b16 %v324
        %v549 = vunpack.c.h.b16 %v324
        %v550 = vunpack.c.l.b16 %v325
        %v551 = vunpack.c.h.b16 %v325
        %v552 = vunpack.c.l.b16 %v326
        %v553 = vunpack.c.h.b16 %v326
        %v554 = vunpack.c.l.b16 %v327
        %v555 = vunpack.c.h.b16 %v327
        %v556 = vunpack.c.l.b16 %v328
        %v557 = vunpack.c.h.b16 %v328
        %v558 = vunpack.c.l.b16 %v329
        %v559 = vunpack.c.h.b16 %v329
        %v560 = vunpack.c.l.b16 %v330
        %v561 = vunpack.c.h.b16 %v330
        %v562 = vunpack.c.l.b16 %v331
        %v563 = vunpack.c.h.b16 %v331
        %v564 = vunpack.c.l.b16 %v332
        %v565 = vunpack.c.h.b16 %v332
        %v566 = vunpack.c.l.b16 %v333
        %v567 = vunpack.c.h.b16 %v333
        %v568 = vunpack.c.l.b16 %v334
        %v569 = vunpack.c.h.b16 %v334
        %v570 = vunpack.c.l.b16 %v335
        %v571 = vunpack.c.h.b16 %v335
        %v572 = vunpack.c.l.b16 %v336
        %v573 = vunpack.c.h.b16 %v336
        %v574 = vunpack.c.l.b16 %v337
        %v575 = vunpack.c.h.b16 %v337
        %v576 = vunpack.c.l.b16 %v338
        %v577 = vunpack.c.h.b16 %v338
        %v578 = vunpack.c.l.b16 %v339
        %v579 = vunpack.c.h.b16 %v339
        %v580 = vunpack.c.l.b16 %v340
        %v581 = vunpack.c.h.b16 %v340
        %v582 = vunpack.c.l.b16 %v341
        %v583 = vunpack.c.h.b16 %v341
        %v584 = vunpack.c.l.b16 %v342
        %v585 = vunpack.c.h.b16 %v342
        %v586 = vunpack.c.l.b16 %v343
        %v587 = vunpack.c.h.b16 %v343
        %v588 = vunpack.c.l.b16 %v344
        %v589 = vunpack.c.h.b16 %v344
        %v590 = vunpack.c.l.b16 %v345
        %v591 = vunpack.c.h.b16 %v345
        %v592 = vunpack.c.l.b16 %v346
        %v593 = vunpack.c.h.b16 %v346
        %v594 = vunpack.c.l.b16 %v347
        %v595 = vunpack.c.h.b16 %v347
        %v596 = vunpack.c.l.b16 %v348
        %v597 = vunpack.c.h.b16 %v348
        %v598 = vunpack.c.l.b16 %v349
        %v599 = vunpack.c.h.b16 %v349
        %v600 = vunpack.c.l.b16 %v350
        %v601 = vunpack.c.h.b16 %v350
        %v602 = vunpack.c.l.b16 %v351
        %v603 = vunpack.c.h.b16 %v351
        %v604 = vunpack.c.l.b16 %v352
        %v605 = vunpack.c.h.b16 %v352
        %v606 = vunpack.c.l.b16 %v353
        %v607 = vunpack.c.h.b16 %v353
        %v608 = vunpack.c.l.b16 %v354
        %v609 = vunpack.c.h.b16 %v354
        %v610 = vunpack.c.l.b16 %v355
        %v611 = vunpack.c.h.b16 %v355
        %v612 = vunpack.c.l.b16 %v356
        %v613 = vunpack.c.h.b16 %v356
        %v614 = vunpack.c.l.b16 %v357
        %v615 = vunpack.c.h.b16 %v357
        %v616 = vunpack.c.l.b16 %v358
        %v617 = vunpack.c.h.b16 %v358
        %v618 = vunpack.c.l.b16 %v359
        %v619 = vunpack.c.h.b16 %v359
        %v620 = vunpack.c.l.b16 %v360
        %v621 = vunpack.c.h.b16 %v360
        %v622 = vunpack.c.l.b16 %v361
        %v623 = vunpack.c.h.b16 %v361
        %v624 = vunpack.c.l.b16 %v362
        %v625 = vunpack.c.h.b16 %v362
        %v626 = vunpack.c.l.b16 %v363
        %v627 = vunpack.c.h.b16 %v363
        %v628 = vunpack.c.l.b16 %v364
        %v629 = vunpack.c.h.b16 %v364
        %v630 = vunpack.c.l.b16 %v365
        %v631 = vunpack.c.h.b16 %v365
        %v632 = vunpack.c.l.b16 %v366
        %v633 = vunpack.c.h.b16 %v366
        %v634 = vunpack.c.l.b16 %v367
        %v635 = vunpack.c.h.b16 %v367
        %v636 = vunpack.c.l.b16 %v368
        %v637 = vunpack.c.h.b16 %v368
        %v638 = vunpack.c.l.b16 %v369
        %v639 = vunpack.c.h.b16 %v369
        %v640 = vunpack.c.l.b16 %v370
        %v641 = vunpack.c.h.b16 %v370
        %v642 = vunpack.c.l.b16 %v371
        %v643 = vunpack.c.h.b16 %v371
        %v644 = vunpack.c.l.b16 %v372
        %v645 = vunpack.c.h.b16 %v372
        %v646 = vunpack.c.l.b16 %v373
        %v647 = vunpack.c.h.b16 %v373
        %v648 = vunpack.c.l.b16 %v374
        %v649 = vunpack.c.h.b16 %v374
        %v650 = vunpack.c.l.b16 %v375
        %v651 = vunpack.c.h.b16 %v375
        %v652 = vunpack.c.l.b16 %v376
        %v653 = vunpack.c.h.b16 %v376
        %v654 = vunpack.c.l.b16 %v377
        %v655 = vunpack.c.h.b16 %v377
        %v656 = vunpack.c.l.b16 %v378
        %v657 = vunpack.c.h.b16 %v378
        %v658 = vunpack.c.l.b16 %v379
        %v659 = vunpack.c.h.b16 %v379
        %v660 = vunpack.c.l.b16 %v380
        %v661 = vunpack.c.h.b16 %v380
        %v662 = vunpack.c.l.b16 %v381
        %v663 = vunpack.c.h.b16 %v381
        %v664 = vunpack.c.l.b16 %v382
        %v665 = vunpack.c.h.b16 %v382
        %v666 = vunpack.c.l.b16 %v383
        %v667 = vunpack.c.h.b16 %v383
        %v668 = vunpack.c.l.b16 %v384
        %v669 = vunpack.c.h.b16 %v384
        %v670 = vunpack.c.l.b16 %v385
        %v671 = vunpack.c.h.b16 %v385
        %v672 = vpack.c.b16 %v546, %v544
        %v673 = vpack.c.b16 %v547, %v545
        %v674 = vpack.c.b16 %v550, %v548
        %v675 = vpack.c.b16 %v551, %v549
        %v676 = vpack.c.b16 %v554, %v552
        %v677 = vpack.c.b16 %v555, %v553
        %v678 = vpack.c.b16 %v558, %v556
        %v679 = vpack.c.b16 %v559, %v557
        %v680 = vpack.c.b16 %v562, %v560
        %v681 = vpack.c.b16 %v563, %v561
        %v682 = vpack.c.b16 %v566, %v564
        %v683 = vpack.c.b16 %v567, %v565
        %v684 = vpack.c.b16 %v570, %v568
        %v685 = vpack.c.b16 %v571, %v569
        %v686 = vpack.c.b16 %v574, %v572
        %v687 = vpack.c.b16 %v575, %v573
        %v688 = vpack.c.b16 %v578, %v576
        %v689 = vpack.c.b16 %v579, %v577
        %v690 = vpack.c.b16 %v582, %v580
        %v691 = vpack.c.b16 %v583, %v581
        %v692 = vpack.c.b16 %v586, %v584
        %v693 = vpack.c.b16 %v587, %v585
        %v694 = vpack.c.b16 %v590, %v588
        %v695 = vpack.c.b16 %v591, %v589
        %v696 = vpack.c.b16 %v594, %v592
        %v697 = vpack.c.b16 %v595, %v593
        %v698 = vpack.c.b16 %v598, %v596
        %v699 = vpack.c.b16 %v599, %v597
        %v700 = vpack.c.b16 %v602, %v600
        %v701 = vpack.c.b16 %v603, %v601
        %v702 = vpack.c.b16 %v606, %v604
        %v703 = vpack.c.b16 %v607, %v605
        %v704 = vpack.c.b16 %v610, %v608
        %v705 = vpack.c.b16 %v611, %v609
        %v706 = vpack.c.b16 %v614, %v612
        %v707 = vpack.c.b16 %v615, %v613
        %v708 = vpack.c.b16 %v618, %v616
        %v709 = vpack.c.b16 %v619, %v617
        %v710 = vpack.c.b16 %v622, %v620
        %v711 = vpack.c.b16 %v623, %v621
        %v712 = vpack.c.b16 %v626, %v624
        %v713 = vpack.c.b16 %v627, %v625
        %v714 = vpack.c.b16 %v630, %v628
        %v715 = vpack.c.b16 %v631, %v629
        %v716 = vpack.c.b16 %v634, %v632
        %v717 = vpack.c.b16 %v635, %v633
        %v718 = vpack.c.b16 %v638, %v636
        %v719 = vpack.c.b16 %v639, %v637
        %v720 = vpack.c.b16 %v642, %v640
        %v721 = vpack.c.b16 %v643, %v641
        %v722 = vpack.c.b16 %v646, %v644
        %v723 = vpack.c.b16 %v647, %v645
        %v724 = vpack.c.b16 %v650, %v648
        %v725 = vpack.c.b16 %v651, %v649
        %v726 = vpack.c.b16 %v654, %v652
        %v727 = vpack.c.b16 %v655, %v653
        %v728 = vpack.c.b16 %v658, %v656
        %v729 = vpack.c.b16 %v659, %v657
        %v730 = vpack.c.b16 %v662, %v660
        %v731 = vpack.c.b16 %v663, %v661
        %v732 = vpack.c.b16 %v666, %v664
        %v733 = vpack.c.b16 %v667, %v665
        %v734 = vpack.c.b16 %v670, %v668
        %v735 = vpack.c.b16 %v671, %v669
        %800 = vmatprep.subr.bf16.mxu0 %v673
        %801 = vmatpush1.bf16.msra.mxu0 %v672
        %802 = vmatprep.subr.bf16.mxu0 %v675
        %803 = vmatpush1.bf16.msra.mxu0 %v674
        %804 = vmatprep.subr.bf16.mxu0 %v677
        %805 = vmatpush1.bf16.msra.mxu0 %v676
        %806 = vmatprep.subr.bf16.mxu0 %v679
        %807 = vmatpush1.bf16.msra.mxu0 %v678
        %808 = vmatprep.subr.bf16.mxu0 %v681
        %809 = vmatpush1.bf16.msra.mxu0 %v680
        %810 = vmatprep.subr.bf16.mxu0 %v683
        %811 = vmatpush1.bf16.msra.mxu0 %v682
        %812 = vmatprep.subr.bf16.mxu0 %v685
        %813 = vmatpush1.bf16.msra.mxu0 %v684
        %814 = vmatprep.subr.bf16.mxu0 %v687
        %815 = vmatpush1.bf16.msra.mxu0 %v686
        %816 = vmatprep.subr.bf16.mxu0 %v689
        %817 = vmatpush1.bf16.msra.mxu0 %v688
        %818 = vmatprep.subr.bf16.mxu0 %v691
        %819 = vmatpush1.bf16.msra.mxu0 %v690
        %820 = vmatprep.subr.bf16.mxu0 %v693
        %821 = vmatpush1.bf16.msra.mxu0 %v692
        %822 = vmatprep.subr.bf16.mxu0 %v695
        %823 = vmatpush1.bf16.msra.mxu0 %v694
        %824 = vmatprep.subr.bf16.mxu0 %v697
        %825 = vmatpush1.bf16.msra.mxu0 %v696
        %826 = vmatprep.subr.bf16.mxu0 %v699
        %827 = vmatpush1.bf16.msra.mxu0 %v698
        %828 = vmatprep.subr.bf16.mxu0 %v701
        %829 = vmatpush1.bf16.msra.mxu0 %v700
        %830 = vmatprep.subr.bf16.mxu0 %v703
        %831 = vmatpush1.bf16.msra.mxu0 %v702
        %832 = vmatprep.mubr.bf16.mxu0 %v473
        %833 = vmatmul.mubr.bf16.gmra.mrb[0].mxu0 %v466
        %v834 = vpop.f32.mrb[0].mxu0
        %v835 = vadd.f32 0.0, %v834
        %v836 = vpop.f32.mrb[0].mxu0
        %v837 = vadd.f32 0.0, %v836
        %v838 = vpop.f32.mrb[0].mxu0
        %v839 = vpop.f32.mrb[0].mxu0
        %840 = vdwg.mxu0
        %841 = vmatprep.subr.bf16.mxu0 %v705
        %842 = vmatpush1.bf16.msra.mxu0 %v704
        %843 = vmatprep.subr.bf16.mxu0 %v707
        %844 = vmatpush1.bf16.msra.mxu0 %v706
        %845 = vmatprep.subr.bf16.mxu0 %v709
        %846 = vmatpush1.bf16.msra.mxu0 %v708
        %847 = vmatprep.subr.bf16.mxu0 %v711
        %848 = vmatpush1.bf16.msra.mxu0 %v710
        %849 = vmatprep.subr.bf16.mxu0 %v713
        %850 = vmatpush1.bf16.msra.mxu0 %v712
        %851 = vmatprep.subr.bf16.mxu0 %v715
        %852 = vmatpush1.bf16.msra.mxu0 %v714
        %853 = vmatprep.subr.bf16.mxu0 %v717
        %854 = vmatpush1.bf16.msra.mxu0 %v716
        %855 = vmatprep.subr.bf16.mxu0 %v719
        %856 = vmatpush1.bf16.msra.mxu0 %v718
        %857 = vmatprep.subr.bf16.mxu0 %v721
        %858 = vmatpush1.bf16.msra.mxu0 %v720
        %859 = vmatprep.subr.bf16.mxu0 %v723
        %860 = vmatpush1.bf16.msra.mxu0 %v722
        %861 = vmatprep.subr.bf16.mxu0 %v725
        %862 = vmatpush1.bf16.msra.mxu0 %v724
        %863 = vmatprep.subr.bf16.mxu0 %v727
        %864 = vmatpush1.bf16.msra.mxu0 %v726
        %865 = vmatprep.subr.bf16.mxu0 %v729
        %866 = vmatpush1.bf16.msra.mxu0 %v728
        %867 = vmatprep.subr.bf16.mxu0 %v731
        %868 = vmatpush1.bf16.msra.mxu0 %v730
        %869 = vmatprep.subr.bf16.mxu0 %v733
        %870 = vmatpush1.bf16.msra.mxu0 %v732
        %871 = vmatprep.subr.bf16.mxu0 %v735
        %872 = vmatpush1.bf16.msra.mxu0 %v734
        %873 = vmatprep.mubr.bf16.mxu0 %v475
        %874 = vmatmul.mubr.bf16.gmra.mrb[0].mxu0 %v474
        %v875 = vpop.f32.mrb[0].mxu0
        %v876 = vadd.f32 %v835, %v875
        %v877 = vpop.f32.mrb[0].mxu0
        %v878 = vadd.f32 %v837, %v877
        %v879 = vpop.f32.mrb[0].mxu0
        %v880 = vpop.f32.mrb[0].mxu0
        %881 = vdwg.mxu0
        %v884 = vunpack.c.l.s4 1966171168
        %v885 = vunpack.c.0.s8 %v884
        %v886 = vlaneseq
        %v887 = vshrl.u32 %v886, 7
        %v888 = vsub.s32 %v885, %v887
        %v889 = vrot.slane %v321, %v888
        %v890 = vcombine.high %v889, %v889
        %v892 = vunpack.c.l.s4 1966171168
        %v893 = vunpack.c.0.s8 %v892
        %v894 = vlaneseq
        %v895 = vshrl.u32 %v894, 7
        %v896 = vsub.s32 %v893, %v895
        %v897 = vrot.slane %v889, %v896
        %v899 = vunpack.c.l.s4 1966171168
        %v900 = vunpack.c.0.s8 %v899
        %v901 = vlaneseq
        %v902 = vshrl.u32 %v901, 7
        %v903 = vsub.s32 %v900, %v902
        %v904 = vrot.slane %v890, %v903
        %v905 = vcombine.high %v897, %v897
        %v906 = vcombine.high %v904, %v904
        %v975 = vunpack.c.l.b16 %v387
        %v976 = vunpack.c.h.b16 %v387
        %v977 = vunpack.c.l.b16 %v388
        %v978 = vunpack.c.h.b16 %v388
        %v979 = vunpack.c.l.b16 %v389
        %v980 = vunpack.c.h.b16 %v389
        %v981 = vunpack.c.l.b16 %v390
        %v982 = vunpack.c.h.b16 %v390
        %v983 = vunpack.c.l.b16 %v391
        %v984 = vunpack.c.h.b16 %v391
        %v985 = vunpack.c.l.b16 %v392
        %v986 = vunpack.c.h.b16 %v392
        %v987 = vunpack.c.l.b16 %v393
        %v988 = vunpack.c.h.b16 %v393
        %v989 = vunpack.c.l.b16 %v394
        %v990 = vunpack.c.h.b16 %v394
        %v991 = vunpack.c.l.b16 %v395
        %v992 = vunpack.c.h.b16 %v395
        %v993 = vunpack.c.l.b16 %v396
        %v994 = vunpack.c.h.b16 %v396
        %v995 = vunpack.c.l.b16 %v397
        %v996 = vunpack.c.h.b16 %v397
        %v997 = vunpack.c.l.b16 %v398
        %v998 = vunpack.c.h.b16 %v398
        %v999 = vunpack.c.l.b16 %v399
        %v1000 = vunpack.c.h.b16 %v399
        %v1001 = vunpack.c.l.b16 %v400
        %v1002 = vunpack.c.h.b16 %v400
        %v1003 = vunpack.c.l.b16 %v401
        %v1004 = vunpack.c.h.b16 %v401
        %v1005 = vunpack.c.l.b16 %v402
        %v1006 = vunpack.c.h.b16 %v402
        %v1007 = vunpack.c.l.b16 %v403
        %v1008 = vunpack.c.h.b16 %v403
        %v1009 = vunpack.c.l.b16 %v404
        %v1010 = vunpack.c.h.b16 %v404
        %v1011 = vunpack.c.l.b16 %v405
        %v1012 = vunpack.c.h.b16 %v405
        %v1013 = vunpack.c.l.b16 %v406
        %v1014 = vunpack.c.h.b16 %v406
        %v1015 = vunpack.c.l.b16 %v407
        %v1016 = vunpack.c.h.b16 %v407
        %v1017 = vunpack.c.l.b16 %v408
        %v1018 = vunpack.c.h.b16 %v408
        %v1019 = vunpack.c.l.b16 %v409
        %v1020 = vunpack.c.h.b16 %v409
        %v1021 = vunpack.c.l.b16 %v410
        %v1022 = vunpack.c.h.b16 %v410
        %v1023 = vunpack.c.l.b16 %v411
        %v1024 = vunpack.c.h.b16 %v411
        %v1025 = vunpack.c.l.b16 %v412
        %v1026 = vunpack.c.h.b16 %v412
        %v1027 = vunpack.c.l.b16 %v413
        %v1028 = vunpack.c.h.b16 %v413
        %v1029 = vunpack.c.l.b16 %v414
        %v1030 = vunpack.c.h.b16 %v414
        %v1031 = vunpack.c.l.b16 %v415
        %v1032 = vunpack.c.h.b16 %v415
        %v1033 = vunpack.c.l.b16 %v416
        %v1034 = vunpack.c.h.b16 %v416
        %v1035 = vunpack.c.l.b16 %v417
        %v1036 = vunpack.c.h.b16 %v417
        %v1037 = vunpack.c.l.b16 %v418
        %v1038 = vunpack.c.h.b16 %v418
        %v1039 = vunpack.c.l.b16 %v419
        %v1040 = vunpack.c.h.b16 %v419
        %v1041 = vunpack.c.l.b16 %v420
        %v1042 = vunpack.c.h.b16 %v420
        %v1043 = vunpack.c.l.b16 %v421
        %v1044 = vunpack.c.h.b16 %v421
        %v1045 = vunpack.c.l.b16 %v422
        %v1046 = vunpack.c.h.b16 %v422
        %v1047 = vunpack.c.l.b16 %v423
        %v1048 = vunpack.c.h.b16 %v423
        %v1049 = vunpack.c.l.b16 %v424
        %v1050 = vunpack.c.h.b16 %v424
        %v1051 = vunpack.c.l.b16 %v425
        %v1052 = vunpack.c.h.b16 %v425
        %v1053 = vunpack.c.l.b16 %v426
        %v1054 = vunpack.c.h.b16 %v426
        %v1055 = vunpack.c.l.b16 %v427
        %v1056 = vunpack.c.h.b16 %v427
        %v1057 = vunpack.c.l.b16 %v428
        %v1058 = vunpack.c.h.b16 %v428
        %v1059 = vunpack.c.l.b16 %v429
        %v1060 = vunpack.c.h.b16 %v429
        %v1061 = vunpack.c.l.b16 %v430
        %v1062 = vunpack.c.h.b16 %v430
        %v1063 = vunpack.c.l.b16 %v431
        %v1064 = vunpack.c.h.b16 %v431
        %v1065 = vunpack.c.l.b16 %v432
        %v1066 = vunpack.c.h.b16 %v432
        %v1067 = vunpack.c.l.b16 %v433
        %v1068 = vunpack.c.h.b16 %v433
        %v1069 = vunpack.c.l.b16 %v434
        %v1070 = vunpack.c.h.b16 %v434
        %v1071 = vunpack.c.l.b16 %v435
        %v1072 = vunpack.c.h.b16 %v435
        %v1073 = vunpack.c.l.b16 %v436
        %v1074 = vunpack.c.h.b16 %v436
        %v1075 = vunpack.c.l.b16 %v437
        %v1076 = vunpack.c.h.b16 %v437
        %v1077 = vunpack.c.l.b16 %v438
        %v1078 = vunpack.c.h.b16 %v438
        %v1079 = vunpack.c.l.b16 %v439
        %v1080 = vunpack.c.h.b16 %v439
        %v1081 = vunpack.c.l.b16 %v440
        %v1082 = vunpack.c.h.b16 %v440
        %v1083 = vunpack.c.l.b16 %v441
        %v1084 = vunpack.c.h.b16 %v441
        %v1085 = vunpack.c.l.b16 %v442
        %v1086 = vunpack.c.h.b16 %v442
        %v1087 = vunpack.c.l.b16 %v443
        %v1088 = vunpack.c.h.b16 %v443
        %v1089 = vunpack.c.l.b16 %v444
        %v1090 = vunpack.c.h.b16 %v444
        %v1091 = vunpack.c.l.b16 %v445
        %v1092 = vunpack.c.h.b16 %v445
        %v1093 = vunpack.c.l.b16 %v446
        %v1094 = vunpack.c.h.b16 %v446
        %v1095 = vunpack.c.l.b16 %v447
        %v1096 = vunpack.c.h.b16 %v447
        %v1097 = vunpack.c.l.b16 %v448
        %v1098 = vunpack.c.h.b16 %v448
        %v1099 = vunpack.c.l.b16 %v449
        %v1100 = vunpack.c.h.b16 %v449
        %v1101 = vunpack.c.l.b16 %v450
        %v1102 = vunpack.c.h.b16 %v450
        %v1103 = vpack.c.b16 %v977, %v975
        %v1104 = vpack.c.b16 %v978, %v976
        %v1105 = vpack.c.b16 %v981, %v979
        %v1106 = vpack.c.b16 %v982, %v980
        %v1107 = vpack.c.b16 %v985, %v983
        %v1108 = vpack.c.b16 %v986, %v984
        %v1109 = vpack.c.b16 %v989, %v987
        %v1110 = vpack.c.b16 %v990, %v988
        %v1111 = vpack.c.b16 %v993, %v991
        %v1112 = vpack.c.b16 %v994, %v992
        %v1113 = vpack.c.b16 %v997, %v995
        %v1114 = vpack.c.b16 %v998, %v996
        %v1115 = vpack.c.b16 %v1001, %v999
        %v1116 = vpack.c.b16 %v1002, %v1000
        %v1117 = vpack.c.b16 %v1005, %v1003
        %v1118 = vpack.c.b16 %v1006, %v1004
        %v1119 = vpack.c.b16 %v1009, %v1007
        %v1120 = vpack.c.b16 %v1010, %v1008
        %v1121 = vpack.c.b16 %v1013, %v1011
        %v1122 = vpack.c.b16 %v1014, %v1012
        %v1123 = vpack.c.b16 %v1017, %v1015
        %v1124 = vpack.c.b16 %v1018, %v1016
        %v1125 = vpack.c.b16 %v1021, %v1019
        %v1126 = vpack.c.b16 %v1022, %v1020
        %v1127 = vpack.c.b16 %v1025, %v1023
        %v1128 = vpack.c.b16 %v1026, %v1024
        %v1129 = vpack.c.b16 %v1029, %v1027
        %v1130 = vpack.c.b16 %v1030, %v1028
        %v1131 = vpack.c.b16 %v1033, %v1031
        %v1132 = vpack.c.b16 %v1034, %v1032
        %v1133 = vpack.c.b16 %v1037, %v1035
        %v1134 = vpack.c.b16 %v1038, %v1036
        %v1135 = vpack.c.b16 %v1041, %v1039
        %v1136 = vpack.c.b16 %v1042, %v1040
        %v1137 = vpack.c.b16 %v1045, %v1043
        %v1138 = vpack.c.b16 %v1046, %v1044
        %v1139 = vpack.c.b16 %v1049, %v1047
        %v1140 = vpack.c.b16 %v1050, %v1048
        %v1141 = vpack.c.b16 %v1053, %v1051
        %v1142 = vpack.c.b16 %v1054, %v1052
        %v1143 = vpack.c.b16 %v1057, %v1055
        %v1144 = vpack.c.b16 %v1058, %v1056
        %v1145 = vpack.c.b16 %v1061, %v1059
        %v1146 = vpack.c.b16 %v1062, %v1060
        %v1147 = vpack.c.b16 %v1065, %v1063
        %v1148 = vpack.c.b16 %v1066, %v1064
        %v1149 = vpack.c.b16 %v1069, %v1067
        %v1150 = vpack.c.b16 %v1070, %v1068
        %v1151 = vpack.c.b16 %v1073, %v1071
        %v1152 = vpack.c.b16 %v1074, %v1072
        %v1153 = vpack.c.b16 %v1077, %v1075
        %v1154 = vpack.c.b16 %v1078, %v1076
        %v1155 = vpack.c.b16 %v1081, %v1079
        %v1156 = vpack.c.b16 %v1082, %v1080
        %v1157 = vpack.c.b16 %v1085, %v1083
        %v1158 = vpack.c.b16 %v1086, %v1084
        %v1159 = vpack.c.b16 %v1089, %v1087
        %v1160 = vpack.c.b16 %v1090, %v1088
        %v1161 = vpack.c.b16 %v1093, %v1091
        %v1162 = vpack.c.b16 %v1094, %v1092
        %v1163 = vpack.c.b16 %v1097, %v1095
        %v1164 = vpack.c.b16 %v1098, %v1096
        %v1165 = vpack.c.b16 %v1101, %v1099
        %v1166 = vpack.c.b16 %v1102, %v1100
        %1231 = vmatprep.subr.bf16.mxu0 %v1104
        %1232 = vmatpush1.bf16.msra.mxu0 %v1103
        %1233 = vmatprep.subr.bf16.mxu0 %v1106
        %1234 = vmatpush1.bf16.msra.mxu0 %v1105
        %1235 = vmatprep.subr.bf16.mxu0 %v1108
        %1236 = vmatpush1.bf16.msra.mxu0 %v1107
        %1237 = vmatprep.subr.bf16.mxu0 %v1110
        %1238 = vmatpush1.bf16.msra.mxu0 %v1109
        %1239 = vmatprep.subr.bf16.mxu0 %v1112
        %1240 = vmatpush1.bf16.msra.mxu0 %v1111
        %1241 = vmatprep.subr.bf16.mxu0 %v1114
        %1242 = vmatpush1.bf16.msra.mxu0 %v1113
        %1243 = vmatprep.subr.bf16.mxu0 %v1116
        %1244 = vmatpush1.bf16.msra.mxu0 %v1115
        %1245 = vmatprep.subr.bf16.mxu0 %v1118
        %1246 = vmatpush1.bf16.msra.mxu0 %v1117
        %1247 = vmatprep.subr.bf16.mxu0 %v1120
        %1248 = vmatpush1.bf16.msra.mxu0 %v1119
        %1249 = vmatprep.subr.bf16.mxu0 %v1122
        %1250 = vmatpush1.bf16.msra.mxu0 %v1121
        %1251 = vmatprep.subr.bf16.mxu0 %v1124
        %1252 = vmatpush1.bf16.msra.mxu0 %v1123
        %1253 = vmatprep.subr.bf16.mxu0 %v1126
        %1254 = vmatpush1.bf16.msra.mxu0 %v1125
        %1255 = vmatprep.subr.bf16.mxu0 %v1128
        %1256 = vmatpush1.bf16.msra.mxu0 %v1127
        %1257 = vmatprep.subr.bf16.mxu0 %v1130
        %1258 = vmatpush1.bf16.msra.mxu0 %v1129
        %1259 = vmatprep.subr.bf16.mxu0 %v1132
        %1260 = vmatpush1.bf16.msra.mxu0 %v1131
        %1261 = vmatprep.subr.bf16.mxu0 %v1134
        %1262 = vmatpush1.bf16.msra.mxu0 %v1133
        %1263 = vmatprep.mubr.bf16.mxu0 %v904
        %1264 = vmatmul.mubr.bf16.gmra.mrb[0].mxu0 %v897
        %v1265 = vpop.f32.mrb[0].mxu0
        %v1266 = vadd.f32 0.0, %v1265
        %v1267 = vpop.f32.mrb[0].mxu0
        %v1268 = vadd.f32 0.0, %v1267
        %v1269 = vpop.f32.mrb[0].mxu0
        %v1270 = vpop.f32.mrb[0].mxu0
        %1271 = vdwg.mxu0
        %1272 = vmatprep.subr.bf16.mxu0 %v1136
        %1273 = vmatpush1.bf16.msra.mxu0 %v1135
        %1274 = vmatprep.subr.bf16.mxu0 %v1138
        %1275 = vmatpush1.bf16.msra.mxu0 %v1137
        %1276 = vmatprep.subr.bf16.mxu0 %v1140
        %1277 = vmatpush1.bf16.msra.mxu0 %v1139
        %1278 = vmatprep.subr.bf16.mxu0 %v1142
        %1279 = vmatpush1.bf16.msra.mxu0 %v1141
        %1280 = vmatprep.subr.bf16.mxu0 %v1144
        %1281 = vmatpush1.bf16.msra.mxu0 %v1143
        %1282 = vmatprep.subr.bf16.mxu0 %v1146
        %1283 = vmatpush1.bf16.msra.mxu0 %v1145
        %1284 = vmatprep.subr.bf16.mxu0 %v1148
        %1285 = vmatpush1.bf16.msra.mxu0 %v1147
        %1286 = vmatprep.subr.bf16.mxu0 %v1150
        %1287 = vmatpush1.bf16.msra.mxu0 %v1149
        %1288 = vmatprep.subr.bf16.mxu0 %v1152
        %1289 = vmatpush1.bf16.msra.mxu0 %v1151
        %1290 = vmatprep.subr.bf16.mxu0 %v1154
        %1291 = vmatpush1.bf16.msra.mxu0 %v1153
        %1292 = vmatprep.subr.bf16.mxu0 %v1156
        %1293 = vmatpush1.bf16.msra.mxu0 %v1155
        %1294 = vmatprep.subr.bf16.mxu0 %v1158
        %1295 = vmatpush1.bf16.msra.mxu0 %v1157
        %1296 = vmatprep.subr.bf16.mxu0 %v1160
        %1297 = vmatpush1.bf16.msra.mxu0 %v1159
        %1298 = vmatprep.subr.bf16.mxu0 %v1162
        %1299 = vmatpush1.bf16.msra.mxu0 %v1161
        %1300 = vmatprep.subr.bf16.mxu0 %v1164
        %1301 = vmatpush1.bf16.msra.mxu0 %v1163
        %1302 = vmatprep.subr.bf16.mxu0 %v1166
        %1303 = vmatpush1.bf16.msra.mxu0 %v1165
        %1304 = vmatprep.mubr.bf16.mxu0 %v906
        %1305 = vmatmul.mubr.bf16.gmra.mrb[0].mxu0 %v905
        %v1306 = vpop.f32.mrb[0].mxu0
        %v1307 = vadd.f32 %v1266, %v1306
        %v1308 = vpop.f32.mrb[0].mxu0
        %v1309 = vadd.f32 %v1268, %v1308
        %v1310 = vpop.f32.mrb[0].mxu0
        %v1311 = vpop.f32.mrb[0].mxu0
        %1312 = vdwg.mxu0
        %1313 = vmatprep.subr.bf16.mxu0 %v673
        %1314 = vmatpush1.bf16.msra.mxu0 %v672
        %1315 = vmatprep.subr.bf16.mxu0 %v675
        %1316 = vmatpush1.bf16.msra.mxu0 %v674
        %1317 = vmatprep.subr.bf16.mxu0 %v677
        %1318 = vmatpush1.bf16.msra.mxu0 %v676
        %1319 = vmatprep.subr.bf16.mxu0 %v679
        %1320 = vmatpush1.bf16.msra.mxu0 %v678
        %1321 = vmatprep.subr.bf16.mxu0 %v681
        %1322 = vmatpush1.bf16.msra.mxu0 %v680
        %1323 = vmatprep.subr.bf16.mxu0 %v683
        %1324 = vmatpush1.bf16.msra.mxu0 %v682
        %1325 = vmatprep.subr.bf16.mxu0 %v685
        %1326 = vmatpush1.bf16.msra.mxu0 %v684
        %1327 = vmatprep.subr.bf16.mxu0 %v687
        %1328 = vmatpush1.bf16.msra.mxu0 %v686
        %1329 = vmatprep.subr.bf16.mxu0 %v689
        %1330 = vmatpush1.bf16.msra.mxu0 %v688
        %1331 = vmatprep.subr.bf16.mxu0 %v691
        %1332 = vmatpush1.bf16.msra.mxu0 %v690
        %1333 = vmatprep.subr.bf16.mxu0 %v693
        %1334 = vmatpush1.bf16.msra.mxu0 %v692
        %1335 = vmatprep.subr.bf16.mxu0 %v695
        %1336 = vmatpush1.bf16.msra.mxu0 %v694
        %1337 = vmatprep.subr.bf16.mxu0 %v697
        %1338 = vmatpush1.bf16.msra.mxu0 %v696
        %1339 = vmatprep.subr.bf16.mxu0 %v699
        %1340 = vmatpush1.bf16.msra.mxu0 %v698
        %1341 = vmatprep.subr.bf16.mxu0 %v701
        %1342 = vmatpush1.bf16.msra.mxu0 %v700
        %1343 = vmatprep.subr.bf16.mxu0 %v703
        %1344 = vmatpush1.bf16.msra.mxu0 %v702
        %1345 = vmatprep.mubr.bf16.mxu0 %v904
        %1346 = vmatmul.mubr.bf16.gmra.mrb[0].mxu0 %v897
        %v1347 = vpop.f32.mrb[0].mxu0
        %v1348 = vadd.f32 0.0, %v1347
        %v1349 = vpop.f32.mrb[0].mxu0
        %v1350 = vadd.f32 0.0, %v1349
        %v1351 = vpop.f32.mrb[0].mxu0
        %v1352 = vpop.f32.mrb[0].mxu0
        %1353 = vdwg.mxu0
        %1354 = vmatprep.subr.bf16.mxu0 %v705
        %1355 = vmatpush1.bf16.msra.mxu0 %v704
        %1356 = vmatprep.subr.bf16.mxu0 %v707
        %1357 = vmatpush1.bf16.msra.mxu0 %v706
        %1358 = vmatprep.subr.bf16.mxu0 %v709
        %1359 = vmatpush1.bf16.msra.mxu0 %v708
        %1360 = vmatprep.subr.bf16.mxu0 %v711
        %1361 = vmatpush1.bf16.msra.mxu0 %v710
        %1362 = vmatprep.subr.bf16.mxu0 %v713
        %1363 = vmatpush1.bf16.msra.mxu0 %v712
        %1364 = vmatprep.subr.bf16.mxu0 %v715
        %1365 = vmatpush1.bf16.msra.mxu0 %v714
        %1366 = vmatprep.subr.bf16.mxu0 %v717
        %1367 = vmatpush1.bf16.msra.mxu0 %v716
        %1368 = vmatprep.subr.bf16.mxu0 %v719
        %1369 = vmatpush1.bf16.msra.mxu0 %v718
        %1370 = vmatprep.subr.bf16.mxu0 %v721
        %1371 = vmatpush1.bf16.msra.mxu0 %v720
        %1372 = vmatprep.subr.bf16.mxu0 %v723
        %1373 = vmatpush1.bf16.msra.mxu0 %v722
        %1374 = vmatprep.subr.bf16.mxu0 %v725
        %1375 = vmatpush1.bf16.msra.mxu0 %v724
        %1376 = vmatprep.subr.bf16.mxu0 %v727
        %1377 = vmatpush1.bf16.msra.mxu0 %v726
        %1378 = vmatprep.subr.bf16.mxu0 %v729
        %1379 = vmatpush1.bf16.msra.mxu0 %v728
        %1380 = vmatprep.subr.bf16.mxu0 %v731
        %1381 = vmatpush1.bf16.msra.mxu0 %v730
        %1382 = vmatprep.subr.bf16.mxu0 %v733
        %1383 = vmatpush1.bf16.msra.mxu0 %v732
        %1384 = vmatprep.subr.bf16.mxu0 %v735
        %1385 = vmatpush1.bf16.msra.mxu0 %v734
        %1386 = vmatprep.mubr.bf16.mxu0 %v906
        %1387 = vmatmul.mubr.bf16.gmra.mrb[0].mxu0 %v905
        %v1388 = vpop.f32.mrb[0].mxu0
        %v1389 = vadd.f32 %v1348, %v1388
        %v1390 = vpop.f32.mrb[0].mxu0
        %v1391 = vadd.f32 %v1350, %v1390
        %v1392 = vpop.f32.mrb[0].mxu0
        %v1393 = vpop.f32.mrb[0].mxu0
        %1394 = vdwg.mxu0
        %v1395 = vld [vmem:[#allocation2] sm:$0xf]
        %v1396 = vsub.f32 %v876, %v1307
        %v1397 = vsub.f32 %v878, %v1309
        %v1400 = vcombine.low %v1396, %v1397
        %v1402 = vunpack.c.l.s4 1983009808
        %v1403 = vunpack.c.0.s8 %v1402
        %v1404 = vlaneseq
        %v1405 = vshrl.u32 %v1404, 7
        %v1406 = vsub.s32 %v1403, %v1405
        %v1407 = vrot.slane %v1400, %v1406
        %v1409 = vadd.f32 %v1395, %v1407
        %1410 = vst [vmem:[#allocation2] sm:$0xf] %v1409
        %s1411 = scalar_lea.vmem [#allocation2], 4
        %v1412 = vld [vmem:[%s1411] sm:$0xf]
        %1413 = vmatprep.subr.bf16.mxu0 %v1104
        %1414 = vmatpush1.bf16.msra.mxu0 %v1103
        %1415 = vmatprep.subr.bf16.mxu0 %v1106
        %1416 = vmatpush1.bf16.msra.mxu0 %v1105
        %1417 = vmatprep.subr.bf16.mxu0 %v1108
        %1418 = vmatpush1.bf16.msra.mxu0 %v1107
        %1419 = vmatprep.subr.bf16.mxu0 %v1110
        %1420 = vmatpush1.bf16.msra.mxu0 %v1109
        %1421 = vmatprep.subr.bf16.mxu0 %v1112
        %1422 = vmatpush1.bf16.msra.mxu0 %v1111
        %1423 = vmatprep.subr.bf16.mxu0 %v1114
        %1424 = vmatpush1.bf16.msra.mxu0 %v1113
        %1425 = vmatprep.subr.bf16.mxu0 %v1116
        %1426 = vmatpush1.bf16.msra.mxu0 %v1115
        %1427 = vmatprep.subr.bf16.mxu0 %v1118
        %1428 = vmatpush1.bf16.msra.mxu0 %v1117
        %1429 = vmatprep.subr.bf16.mxu0 %v1120
        %1430 = vmatpush1.bf16.msra.mxu0 %v1119
        %1431 = vmatprep.subr.bf16.mxu0 %v1122
        %1432 = vmatpush1.bf16.msra.mxu0 %v1121
        %1433 = vmatprep.subr.bf16.mxu0 %v1124
        %1434 = vmatpush1.bf16.msra.mxu0 %v1123
        %1435 = vmatprep.subr.bf16.mxu0 %v1126
        %1436 = vmatpush1.bf16.msra.mxu0 %v1125
        %1437 = vmatprep.subr.bf16.mxu0 %v1128
        %1438 = vmatpush1.bf16.msra.mxu0 %v1127
        %1439 = vmatprep.subr.bf16.mxu0 %v1130
        %1440 = vmatpush1.bf16.msra.mxu0 %v1129
        %1441 = vmatprep.subr.bf16.mxu0 %v1132
        %1442 = vmatpush1.bf16.msra.mxu0 %v1131
        %1443 = vmatprep.subr.bf16.mxu0 %v1134
        %1444 = vmatpush1.bf16.msra.mxu0 %v1133
        %1445 = vmatprep.mubr.bf16.mxu0 %v473
        %1446 = vmatmul.mubr.bf16.gmra.mrb[0].mxu0 %v466
        %v1447 = vpop.f32.mrb[0].mxu0
        %v1448 = vadd.f32 %v1389, %v1447
        %v1449 = vpop.f32.mrb[0].mxu0
        %v1450 = vadd.f32 %v1391, %v1449
        %v1451 = vpop.f32.mrb[0].mxu0
        %v1452 = vpop.f32.mrb[0].mxu0
        %1453 = vdwg.mxu0
        %1454 = vmatprep.subr.bf16.mxu0 %v1136
        %1455 = vmatpush1.bf16.msra.mxu0 %v1135
        %1456 = vmatprep.subr.bf16.mxu0 %v1138
        %1457 = vmatpush1.bf16.msra.mxu0 %v1137
        %1458 = vmatprep.subr.bf16.mxu0 %v1140
        %1459 = vmatpush1.bf16.msra.mxu0 %v1139
        %1460 = vmatprep.subr.bf16.mxu0 %v1142
        %1461 = vmatpush1.bf16.msra.mxu0 %v1141
        %1462 = vmatprep.subr.bf16.mxu0 %v1144
        %1463 = vmatpush1.bf16.msra.mxu0 %v1143
        %1464 = vmatprep.subr.bf16.mxu0 %v1146
        %1465 = vmatpush1.bf16.msra.mxu0 %v1145
        %1466 = vmatprep.subr.bf16.mxu0 %v1148
        %1467 = vmatpush1.bf16.msra.mxu0 %v1147
        %1468 = vmatprep.subr.bf16.mxu0 %v1150
        %1469 = vmatpush1.bf16.msra.mxu0 %v1149
        %1470 = vmatprep.subr.bf16.mxu0 %v1152
        %1471 = vmatpush1.bf16.msra.mxu0 %v1151
        %1472 = vmatprep.subr.bf16.mxu0 %v1154
        %1473 = vmatpush1.bf16.msra.mxu0 %v1153
        %1474 = vmatprep.subr.bf16.mxu0 %v1156
        %1475 = vmatpush1.bf16.msra.mxu0 %v1155
        %1476 = vmatprep.subr.bf16.mxu0 %v1158
        %1477 = vmatpush1.bf16.msra.mxu0 %v1157
        %1478 = vmatprep.subr.bf16.mxu0 %v1160
        %1479 = vmatpush1.bf16.msra.mxu0 %v1159
        %1480 = vmatprep.subr.bf16.mxu0 %v1162
        %1481 = vmatpush1.bf16.msra.mxu0 %v1161
        %1482 = vmatprep.subr.bf16.mxu0 %v1164
        %1483 = vmatpush1.bf16.msra.mxu0 %v1163
        %1484 = vmatprep.subr.bf16.mxu0 %v1166
        %1485 = vmatpush1.bf16.msra.mxu0 %v1165
        %1486 = vmatprep.mubr.bf16.mxu0 %v475
        %1487 = vmatmul.mubr.bf16.gmra.mrb[0].mxu0 %v474
        %v1488 = vpop.f32.mrb[0].mxu0
        %v1489 = vadd.f32 %v1448, %v1488
        %v1490 = vpop.f32.mrb[0].mxu0
        %v1491 = vadd.f32 %v1450, %v1490
        %v1492 = vpop.f32.mrb[0].mxu0
        %v1493 = vpop.f32.mrb[0].mxu0
        %1494 = vdwg.mxu0
        %v1497 = vcombine.low %v1489, %v1491
        %v1499 = vunpack.c.l.s4 1983009808
        %v1500 = vunpack.c.0.s8 %v1499
        %v1501 = vlaneseq
        %v1502 = vshrl.u32 %v1501, 7
        %v1503 = vsub.s32 %v1500, %v1502
        %v1504 = vrot.slane %v1497, %v1503
        %v1506 = vadd.f32 %v1412, %v1504
        %1507 = vst [vmem:[%s1411] sm:$0xf] %v1506
        %p1508 = scmp.eq.s32.totalorder %s28, 1
        // Predicated region
        $region49: #{tpu_custom_call.1} parent=31 // pred_check
          %p1509 = pneg %p1508
        $region50: #{tpu_custom_call.1} parent=31 // pred_check_branch
          %1511 = sbr.rel (%p1509) target = $region52
        $region51: #{tpu_custom_call.1} parent=31 // pred_region
          %v1512 = vld [vmem:[#allocation2] sm:$0xf]
          %v1513 = vld [vmem:[#allocation2 + $0x4] sm:$0xf]
          %v1514 = vld [vmem:[%s275] sm:$0x3]
          %v1515 = vld [vmem:[%s275 + $0x2] sm:$0x3]
          %v1518 = vlaneseq
          %v1519 = vshrl.u32 %v1518, 7
          %v1520 = vsub.s32 0, %v1519
          %v1521 = vrot.slane %v1514, %v1520
          %v1522 = vlaneseq
          %v1523 = vshrl.u32 %v1522, 7
          %v1524 = vsub.s32 1, %v1523
          %v1525 = vrot.slane %v1514, %v1524
          %v1526 = vlaneseq
          %v1527 = vshrl.u32 %v1526, 7
          %v1528 = vsub.s32 0, %v1527
          %v1529 = vrot.slane %v1515, %v1528
          %v1530 = vlaneseq
          %v1531 = vshrl.u32 %v1530, 7
          %v1532 = vsub.s32 1, %v1531
          %v1533 = vrot.slane %v1515, %v1532
          %v1534 = vcombine.low %v1521, %v1525
          %v1536 = vunpack.c.l.s4 1983009808
          %v1537 = vunpack.c.0.s8 %v1536
          %v1538 = vlaneseq
          %v1539 = vshrl.u32 %v1538, 7
          %v1540 = vsub.s32 %v1537, %v1539
          %v1541 = vrot.slane %v1534, %v1540
          %v1542 = vcombine.low %v1529, %v1533
          %v1544 = vunpack.c.l.s4 1983009808
          %v1545 = vunpack.c.0.s8 %v1544
          %v1546 = vlaneseq
          %v1547 = vshrl.u32 %v1546, 7
          %v1548 = vsub.s32 %v1545, %v1547
          %v1549 = vrot.slane %v1542, %v1548
          %v1552 = vadd.f32 %v1512, %v1541
          %v1553 = vadd.f32 %v1513, %v1549
          %1554 = vst [vmem:[%s307] sm:$0xf] %v1552
          %1555 = vst [vmem:[%s307 + $0x4] sm:$0xf] %v1553
        $region52: #{tpu_custom_call.1} parent=31 // pred_fallthru
          _
        %s1556 = sand.u32 %s123, 1
        %s1557 = scalar_lea.sflag [#allocation5], %s1556
        %s1558 = sand.u32 %s123, 1
        %s1559 = smul.addr %s1558, 8
        %s1560 = scalar_lea.vmem [#allocation9], %s1559
        // Predicated region
        $region53: #{tpu_custom_call.1} parent=31 // pred_check
          %p1561 = pneg %p133
        $region54: #{tpu_custom_call.1} parent=31 // pred_check_branch
          %1563 = sbr.rel (%p1561) target = $region56
        $region55: #{tpu_custom_call.1} parent=31 // pred_region
          %s1564 = smul.u32 2, %s27
          %s1566 = ssub.s32 128, 128
          %1567 = vsyncadd %s1557, %s1566
          %s1568 = smul.addr %s1564, 32
          %s1569 = scalar_lea.hbm %s3, %s1568
          %s1570 = sshll.u32 %s1560, 4
          %s1571 = int_to_ptr.vmem [resolvable:$true] %s1570
          %1576 = dma.vmem_to_hbm [thread:$0]  %s1571, 128, %s1569, %s1557, 64, 256, 4
        $region56: #{tpu_custom_call.1} parent=31 // pred_fallthru
          _
      $region32: #{tpu_custom_call.1} parent=5 // pred_fallthru
        _
      %p1577 = scmp.le.s32.totalorder 2, %s18
      // Predicated region
      $region57: #{tpu_custom_call.1} parent=5 // pred_check
        %p1578 = pneg %p1577
      $region58: #{tpu_custom_call.1} parent=5 // pred_check_branch
        %1580 = sbr.rel (%p1578) target = $region60
      $region59: #{tpu_custom_call.1} parent=5 // pred_region
        %s1581 = ssub.s32 %s18, 2
        // Predicated region
        $region61: #{tpu_custom_call.1} parent=59 // pred_check
          %p1582 = pneg %p139
        $region62: #{tpu_custom_call.1} parent=59 // pred_check_branch
          %1584 = sbr.rel (%p1582) target = $region64
        $region63: #{tpu_custom_call.1} parent=59 // pred_region
          %s1585 = sand.u32 %s124, 1
          %s1586 = scalar_lea.sflag [#allocation5], %s1585
          %s1587 = sand.u32 %s124, 1
          %s1588 = smul.addr %s1587, 8
          %s1589 = scalar_lea.vmem [#allocation9], %s1588
          %1590 = dma.done %s1586, 128
        $region64: #{tpu_custom_call.1} parent=59 // pred_fallthru
          _
      $region60: #{tpu_custom_call.1} parent=5 // pred_fallthru
        _
    $region6: #{tpu_custom_call.1} parent=1 // loop_footer
      %s22 = sadd.s32 1, %s18
    $region7: #{tpu_custom_call.1} parent=1 // loop_footer_branch
      %17 = sbr.rel target = $region3
    $region8: #{tpu_custom_call.1} parent=1 // loop_exit
      _
    %1591 = vsyncpa [#allocation4], 1
    %s1592 = scalar_lea.sflag [#allocation4], 1
    %1593 = vsyncpa %s1592, 1
    %1594 = vsyncpa [#allocation7], 1
    %s1595 = scalar_lea.sflag [#allocation7], 1
    %1596 = vsyncpa %s1595, 1
    %1597 = vsyncpa [#allocation5], 1
    %s1598 = scalar_lea.sflag [#allocation5], 1
    %1599 = vsyncpa %s1598, 1

</llo_original>
